<compile_context>
chip_gen: v7x
topology: tpu7x:2x2x1
jax: 0.10.0
libtpu: 0.0.40
codegen_flags: <defaults>
</compile_context>

<pallas_src>
import numpy as np
import jax
import jax.numpy as jnp
from jax import lax
from jax.experimental import pallas as pl
from jax.experimental.pallas import tpu as pltpu


# ----------------------------------------------------------------------------
# Fused kernel: L-layer LSTM recurrence + sigmoid head, one invocation.
# Row layout of all (T*B, ...) buffers: row t*B + b  <->  (time t, batch b).
# ----------------------------------------------------------------------------
def _make_fused_kernel(L, T, B, H):
    def kernel(*refs):
        x_ref = refs[0]
        p = 1
        layer_refs = []
        for _ in range(L):
            layer_refs.append((refs[p], refs[p + 1], refs[p + 2]))   # (W_ih, W_hh, b)
            p += 3
        wlin_ref, blin_ref, h0_ref, c0_ref = refs[p:p + 4]
        prob_ref, hid_ref, hn_ref, cn_ref = refs[p + 4:p + 8]
        gx_sc, hseq_sc = refs[p + 8:p + 10]

        inp = x_ref[...]                                    # (T*B, in), time-major rows
        for l in range(L):
            wih_ref, whh_ref, b_ref = layer_refs[l]

            # Hoisted input projection: ONE matmul for all T steps of this layer.
            gx_sc[...] = (jnp.dot(inp, wih_ref[...],
                                  preferred_element_type=jnp.float32)
                          + b_ref[...])                     # (T*B, 4H)

            whh = whh_ref[...]                              # (H, 4H), kept resident
            h = h0_ref[l]                                   # (B, H)
            c = c0_ref[l]                                   # (B, H)

            for t in range(T):                              # static unroll: serial chain
                row = t * B
                gates = gx_sc[pl.ds(row, B), :] + jnp.dot(
                    h, whh, preferred_element_type=jnp.float32)      # (B, 4H)
                # gate order [i, f, o, g]: one wide sigmoid + one tanh per step
                sig = jax.nn.sigmoid(gates[:, :3 * H])
                g_g = jnp.tanh(gates[:, 3 * H:])
                i_g = sig[:, :H]
                f_g = sig[:, H:2 * H]
                o_g = sig[:, 2 * H:3 * H]
                c = f_g * c + i_g * g_g
                h = o_g * jnp.tanh(c)
                hseq_sc[pl.ds(row, B), :] = h               # hidden seq stays in VMEM

            hn_ref[l] = h
            cn_ref[l] = c
            inp = hseq_sc[...]                              # next layer's input (T*B, H)

        # Fused head: sigmoid(hidden @ W_lin + b_lin) on the VMEM-resident slab.
        hid_ref[...] = inp
        logits = jnp.dot(inp, wlin_ref[...],
                         preferred_element_type=jnp.float32) + blin_ref[...]
        prob_ref[...] = jax.nn.sigmoid(logits)

    return kernel


# ----------------------------------------------------------------------------
# PositionOpener forward
# ----------------------------------------------------------------------------
def position_opener_forward(x, params, hx=None):
    """x: (B, T, input_size) float32; hx: optional (h0, c0) each (L, B, H).
    Returns (prob (B,T,3), hidden (B,T,H), (h_n, c_n) each (L,B,H))."""
    B, T, in_sz = x.shape
    H = params["hidden_size"]
    L = params["num_layers"]
    O = params["w_lin"].shape[-1]
    if hx is None:
        h0 = jnp.zeros((L, B, H), jnp.float32)
        c0 = jnp.zeros((L, B, H), jnp.float32)
    else:
        h0, c0 = hx

    # time-major rows: row t*B + b  <->  (time t, batch b)   (tiny XLA copy)
    x2d = jnp.transpose(x, (1, 0, 2)).reshape(T * B, in_sz)

    in_specs = [pl.BlockSpec((T * B, in_sz), lambda: (0, 0))]
    args = [x2d]
    for l in range(L):
        lin_sz = in_sz if l == 0 else H
        in_specs += [pl.BlockSpec((lin_sz, 4 * H), lambda: (0, 0)),
                     pl.BlockSpec((H, 4 * H), lambda: (0, 0)),
                     pl.BlockSpec((1, 4 * H), lambda: (0, 0))]
        args += [params[f"w_ih_{l}"], params[f"w_hh_{l}"], params[f"b_{l}"]]
    in_specs += [pl.BlockSpec((H, O), lambda: (0, 0)),
                 pl.BlockSpec((1, O), lambda: (0, 0)),
                 pl.BlockSpec((L, B, H), lambda: (0, 0, 0)),
                 pl.BlockSpec((L, B, H), lambda: (0, 0, 0))]
    args += [params["w_lin"], params["b_lin"], h0, c0]

    out_shape = (jax.ShapeDtypeStruct((T * B, O), jnp.float32),    # prob (time-major)
                 jax.ShapeDtypeStruct((T * B, H), jnp.float32),    # hidden (time-major)
                 jax.ShapeDtypeStruct((L, B, H), jnp.float32),     # h_n
                 jax.ShapeDtypeStruct((L, B, H), jnp.float32))     # c_n
    out_specs = (pl.BlockSpec((T * B, O), lambda: (0, 0)),
                 pl.BlockSpec((T * B, H), lambda: (0, 0)),
                 pl.BlockSpec((L, B, H), lambda: (0, 0, 0)),
                 pl.BlockSpec((L, B, H), lambda: (0, 0, 0)))

    prob2d, hid2d, h_n, c_n = pl.pallas_call(
        _make_fused_kernel(L, T, B, H),
        out_shape=out_shape,
        in_specs=in_specs,
        out_specs=out_specs,
        scratch_shapes=[pltpu.VMEM((T * B, 4 * H), jnp.float32),   # hoisted x @ W_ih
                        pltpu.VMEM((T * B, H), jnp.float32)],      # inter-layer hidden
    )(*args)

    hidden = hid2d.reshape(T, B, H).transpose(1, 0, 2)             # (B, T, H)
    prob = prob2d.reshape(T, B, O).transpose(1, 0, 2)              # (B, T, 3)
    return prob, hidden, (h_n, c_n)


# ----------------------------------------------------------------------------
# Parameter init (PyTorch-style uniform(-1/sqrt(H), 1/sqrt(H))), kernel layout.
# ----------------------------------------------------------------------------
def _reorder_gates(w, H):
    """PyTorch packs LSTM gates as [i, f, g, o]; the kernel wants [i, f, o, g]."""
    return jnp.concatenate([w[:H], w[H:2 * H], w[3 * H:4 * H], w[2 * H:3 * H]], axis=0)


def init_params(key, input_size, hidden_size, num_layers):
    params = {"hidden_size": hidden_size, "num_layers": num_layers}
    H = hidden_size
    k = 1.0 / np.sqrt(H)
    for l in range(num_layers):
        in_sz = input_size if l == 0 else H
        key, k1, k2, k3, k4 = jax.random.split(key, 5)
        w_ih = jax.random.uniform(k1, (4 * H, in_sz), jnp.float32, -k, k)
        w_hh = jax.random.uniform(k2, (4 * H, H), jnp.float32, -k, k)
        b_ih = jax.random.uniform(k3, (4 * H,), jnp.float32, -k, k)
        b_hh = jax.random.uniform(k4, (4 * H,), jnp.float32, -k, k)
        params[f"w_ih_{l}"] = _reorder_gates(w_ih, H).T                 # (in, 4H)
        params[f"w_hh_{l}"] = _reorder_gates(w_hh, H).T                 # (H, 4H)
        params[f"b_{l}"] = _reorder_gates(b_ih + b_hh, H).reshape(1, 4 * H)
    key, k5, k6 = jax.random.split(key, 3)
    w_lin = jax.random.uniform(k5, (3, H), jnp.float32, -k, k)
    b_lin = jax.random.uniform(k6, (3,), jnp.float32, -k, k)
    params["w_lin"] = w_lin.T                                           # (H, 3)
    params["b_lin"] = b_lin.reshape(1, 3)
    return params


# ----------------------------------------------------------------------------
# Pure-JAX reference (same [i,f,o,g] kernel layout) — sanity check only.
# ----------------------------------------------------------------------------
def reference_forward(x, params, hx):
    B, T, _ = x.shape
    H = params["hidden_size"]
    L = params["num_layers"]
    h0, c0 = hx
    layer_in = jnp.transpose(x, (1, 0, 2))          # (T, B, feat)
    h_ns, c_ns = [], []
    for l in range(L):
        w_ih, w_hh, b = params[f"w_ih_{l}"], params[f"w_hh_{l}"], params[f"b_{l}"]

        def step(carry, x_t, w_ih=w_ih, w_hh=w_hh, b=b):
            h, c = carry
            g = x_t @ w_ih + h @ w_hh + b
            i_g = jax.nn.sigmoid(g[:, 0 * H:1 * H])
            f_g = jax.nn.sigmoid(g[:, 1 * H:2 * H])
            o_g = jax.nn.sigmoid(g[:, 2 * H:3 * H])
            g_g = jnp.tanh(g[:, 3 * H:4 * H])
            c = f_g * c + i_g * g_g
            h = o_g * jnp.tanh(c)
            return (h, c), h

        (h_n, c_n), hseq = lax.scan(step, (h0[l], c0[l]), layer_in)
        layer_in = hseq
        h_ns.append(h_n)
        c_ns.append(c_n)
    hidden = jnp.transpose(layer_in, (1, 0, 2))
    prob = jax.nn.sigmoid(hidden.reshape(B * T, H) @ params["w_lin"]
                          + params["b_lin"]).reshape(B, T, 3)
    return prob, hidden, (jnp.stack(h_ns), jnp.stack(c_ns))


if __name__ == "__main__":
    B, T, INPUT_SIZE, HIDDEN_SIZE, NUM_LAYERS = 2, 8, 8, 32, 2

    key = jax.random.PRNGKey(0)
    key, kx, kh, kc = jax.random.split(key, 4)
    x = jax.random.normal(kx, (B, T, INPUT_SIZE), jnp.float32)
    h0 = jax.random.normal(kh, (NUM_LAYERS, B, HIDDEN_SIZE), jnp.float32) * 0.1
    c0 = jax.random.normal(kc, (NUM_LAYERS, B, HIDDEN_SIZE), jnp.float32) * 0.1
    params = init_params(key, INPUT_SIZE, HIDDEN_SIZE, NUM_LAYERS)

    fwd = jax.jit(lambda x, h0, c0: position_opener_forward(x, params, (h0, c0)))
    prob, hidden, (h_n, c_n) = fwd(x, h0, c0)
    jax.block_until_ready((prob, hidden, h_n, c_n))

    # sanity check against pure-JAX reference (loose tol: MXU default precision)
    p_ref, h_ref, (hn_ref, cn_ref) = reference_forward(x, params, (h0, c0))
    np.testing.assert_allclose(np.asarray(prob), np.asarray(p_ref), atol=2e-2, rtol=2e-2)
    np.testing.assert_allclose(np.asarray(hidden), np.asarray(h_ref), atol=2e-2, rtol=2e-2)
    np.testing.assert_allclose(np.asarray(h_n), np.asarray(hn_ref), atol=2e-2, rtol=2e-2)
    np.testing.assert_allclose(np.asarray(c_n), np.asarray(cn_ref), atol=2e-2, rtol=2e-2)

    assert prob.shape == (B, T, 3) and hidden.shape == (B, T, HIDDEN_SIZE)
    assert h_n.shape == (NUM_LAYERS, B, HIDDEN_SIZE)
    assert c_n.shape == (NUM_LAYERS, B, HIDDEN_SIZE)
    print("KERNEL_OK")
</pallas_src>

<mosaic_0001>
module attributes {stable_mosaic.version = 11 : i64} {
  func.func @kernel(%arg0: memref<16x8xf32, #tpu.memory_space<vmem>>, %arg1: memref<8x128xf32, #tpu.memory_space<vmem>>, %arg2: memref<32x128xf32, #tpu.memory_space<vmem>>, %arg3: memref<1x128xf32, #tpu.memory_space<vmem>>, %arg4: memref<32x128xf32, #tpu.memory_space<vmem>>, %arg5: memref<32x128xf32, #tpu.memory_space<vmem>>, %arg6: memref<1x128xf32, #tpu.memory_space<vmem>>, %arg7: memref<32x3xf32, #tpu.memory_space<vmem>>, %arg8: memref<1x3xf32, #tpu.memory_space<vmem>>, %arg9: memref<2x2x32xf32, #tpu.memory_space<vmem>>, %arg10: memref<2x2x32xf32, #tpu.memory_space<vmem>>, %arg11: memref<16x3xf32, #tpu.memory_space<vmem>>, %arg12: memref<16x32xf32, #tpu.memory_space<vmem>>, %arg13: memref<2x2x32xf32, #tpu.memory_space<vmem>>, %arg14: memref<2x2x32xf32, #tpu.memory_space<vmem>>, %arg15: memref<16x128xf32, #tpu.memory_space<vmem>>, %arg16: memref<16x32xf32, #tpu.memory_space<vmem>>) attributes {dimension_semantics = [], scalar_prefetch = 0 : i64, scratch_operands = 2 : i64, tpu.core_type = #tpu.core_type<tc>} {
    %c0 = arith.constant 0 : index
    %c0_0 = arith.constant 0 : index
    %0 = vector.load %arg0[%c0, %c0_0] : memref<16x8xf32, #tpu.memory_space<vmem>>, vector<16x8xf32>
    %c0_1 = arith.constant 0 : index
    %c0_2 = arith.constant 0 : index
    %1 = vector.load %arg1[%c0_1, %c0_2] : memref<8x128xf32, #tpu.memory_space<vmem>>, vector<8x128xf32>
    %cst = arith.constant dense<0.000000e+00> : vector<16x128xf32>
    %2 = tpu.matmul %0, %1, %cst {dimension_numbers = #tpu.dot_dimension_numbers<[1], [0], [0], [1], [0, 0, 1, 1], [], []>} : vector<16x8xf32>, vector<8x128xf32>, vector<16x128xf32> -> vector<16x128xf32>
    %c0_3 = arith.constant 0 : index
    %c0_4 = arith.constant 0 : index
    %3 = vector.load %arg3[%c0_3, %c0_4] : memref<1x128xf32, #tpu.memory_space<vmem>>, vector<1x128xf32>
    %4 = vector.broadcast %3 : vector<1x128xf32> to vector<16x128xf32>
    %5 = arith.addf %2, %4 : vector<16x128xf32>
    %c0_5 = arith.constant 0 : index
    %c0_6 = arith.constant 0 : index
    %6 = vector.load %arg15[%c0_5, %c0_6] : memref<16x128xf32, #tpu.memory_space<vmem>>, vector<16x128xf32>
    tpu.vector_store %arg15[%c0_5, %c0_6], %5 {strides = array<i32>} : memref<16x128xf32, #tpu.memory_space<vmem>>, vector<16x128xf32>,
    %c0_7 = arith.constant 0 : index
    %c0_8 = arith.constant 0 : index
    %7 = vector.load %arg2[%c0_7, %c0_8] : memref<32x128xf32, #tpu.memory_space<vmem>>, vector<32x128xf32>
    %c0_9 = arith.constant 0 : index
    %c0_10 = arith.constant 0 : index
    %c0_11 = arith.constant 0 : index
    %8 = vector.load %arg9[%c0_9, %c0_10, %c0_11] : memref<2x2x32xf32, #tpu.memory_space<vmem>>, vector<1x2x32xf32>
    %9 = vector.shape_cast %8 : vector<1x2x32xf32> to vector<2x32xf32>
    %c0_12 = arith.constant 0 : index
    %c0_13 = arith.constant 0 : index
    %c0_14 = arith.constant 0 : index
    %10 = vector.load %arg10[%c0_12, %c0_13, %c0_14] : memref<2x2x32xf32, #tpu.memory_space<vmem>>, vector<1x2x32xf32>
    %11 = vector.shape_cast %10 : vector<1x2x32xf32> to vector<2x32xf32>
    %c0_15 = arith.constant 0 : index
    %c0_16 = arith.constant 0 : index
    %12 = vector.load %arg15[%c0_15, %c0_16] : memref<16x128xf32, #tpu.memory_space<vmem>>, vector<2x128xf32>
    %cst_17 = arith.constant dense<0.000000e+00> : vector<2x128xf32>
    %13 = tpu.matmul %9, %7, %cst_17 {dimension_numbers = #tpu.dot_dimension_numbers<[1], [0], [0], [1], [0, 0, 1, 1], [], []>} : vector<2x32xf32>, vector<32x128xf32>, vector<2x128xf32> -> vector<2x128xf32>
    %14 = arith.addf %12, %13 : vector<2x128xf32>
    %15 = vector.extract_strided_slice %14 {offsets = [0, 0], sizes = [2, 96], strides = [1, 1]} : vector<2x128xf32> to vector<2x96xf32>
    %16 = arith.negf %15 : vector<2x96xf32>
    %17 = math.exp %16 : vector<2x96xf32>
    %cst_18 = arith.constant 1.000000e+00 : f32
    %18 = vector.broadcast %cst_18 : f32 to vector<2x96xf32>
    %19 = arith.addf %18, %17 : vector<2x96xf32>
    %20 = arith.divf %18, %19 : vector<2x96xf32>
    %21 = vector.extract_strided_slice %14 {offsets = [0, 96], sizes = [2, 32], strides = [1, 1]} : vector<2x128xf32> to vector<2x32xf32>
    %22 = math.tanh %21 : vector<2x32xf32>
    %23 = vector.extract_strided_slice %20 {offsets = [0, 0], sizes = [2, 32], strides = [1, 1]} : vector<2x96xf32> to vector<2x32xf32>
    %24 = vector.extract_strided_slice %20 {offsets = [0, 32], sizes = [2, 32], strides = [1, 1]} : vector<2x96xf32> to vector<2x32xf32>
    %25 = vector.extract_strided_slice %20 {offsets = [0, 64], sizes = [2, 32], strides = [1, 1]} : vector<2x96xf32> to vector<2x32xf32>
    %26 = arith.mulf %24, %11 : vector<2x32xf32>
    %27 = arith.mulf %23, %22 : vector<2x32xf32>
    %28 = arith.addf %26, %27 : vector<2x32xf32>
    %29 = math.tanh %28 : vector<2x32xf32>
    %30 = arith.mulf %25, %29 : vector<2x32xf32>
    %c0_19 = arith.constant 0 : index
    %c0_20 = arith.constant 0 : index
    %31 = vector.load %arg16[%c0_19, %c0_20] : memref<16x32xf32, #tpu.memory_space<vmem>>, vector<2x32xf32>
    tpu.vector_store %arg16[%c0_19, %c0_20], %30 {strides = array<i32>} : memref<16x32xf32, #tpu.memory_space<vmem>>, vector<2x32xf32>,
    %c2 = arith.constant 2 : index
    %c0_21 = arith.constant 0 : index
    %32 = vector.load %arg15[%c2, %c0_21] : memref<16x128xf32, #tpu.memory_space<vmem>>, vector<2x128xf32>
    %cst_22 = arith.constant dense<0.000000e+00> : vector<2x128xf32>
    %33 = tpu.matmul %30, %7, %cst_22 {dimension_numbers = #tpu.dot_dimension_numbers<[1], [0], [0], [1], [0, 0, 1, 1], [], []>} : vector<2x32xf32>, vector<32x128xf32>, vector<2x128xf32> -> vector<2x128xf32>
    %34 = arith.addf %32, %33 : vector<2x128xf32>
    %35 = vector.extract_strided_slice %34 {offsets = [0, 0], sizes = [2, 96], strides = [1, 1]} : vector<2x128xf32> to vector<2x96xf32>
    %36 = arith.negf %35 : vector<2x96xf32>
    %37 = math.exp %36 : vector<2x96xf32>
    %cst_23 = arith.constant 1.000000e+00 : f32
    %38 = vector.broadcast %cst_23 : f32 to vector<2x96xf32>
    %39 = arith.addf %38, %37 : vector<2x96xf32>
    %40 = arith.divf %38, %39 : vector<2x96xf32>
    %41 = vector.extract_strided_slice %34 {offsets = [0, 96], sizes = [2, 32], strides = [1, 1]} : vector<2x128xf32> to vector<2x32xf32>
    %42 = math.tanh %41 : vector<2x32xf32>
    %43 = vector.extract_strided_slice %40 {offsets = [0, 0], sizes = [2, 32], strides = [1, 1]} : vector<2x96xf32> to vector<2x32xf32>
    %44 = vector.extract_strided_slice %40 {offsets = [0, 32], sizes = [2, 32], strides = [1, 1]} : vector<2x96xf32> to vector<2x32xf32>
    %45 = vector.extract_strided_slice %40 {offsets = [0, 64], sizes = [2, 32], strides = [1, 1]} : vector<2x96xf32> to vector<2x32xf32>
    %46 = arith.mulf %44, %28 : vector<2x32xf32>
    %47 = arith.mulf %43, %42 : vector<2x32xf32>
    %48 = arith.addf %46, %47 : vector<2x32xf32>
    %49 = math.tanh %48 : vector<2x32xf32>
    %50 = arith.mulf %45, %49 : vector<2x32xf32>
    %c2_24 = arith.constant 2 : index
    %c0_25 = arith.constant 0 : index
    %51 = vector.load %arg16[%c2_24, %c0_25] : memref<16x32xf32, #tpu.memory_space<vmem>>, vector<2x32xf32>
    tpu.vector_store %arg16[%c2_24, %c0_25], %50 {strides = array<i32>} : memref<16x32xf32, #tpu.memory_space<vmem>>, vector<2x32xf32>,
    %c4 = arith.constant 4 : index
    %c0_26 = arith.constant 0 : index
    %52 = vector.load %arg15[%c4, %c0_26] : memref<16x128xf32, #tpu.memory_space<vmem>>, vector<2x128xf32>
    %cst_27 = arith.constant dense<0.000000e+00> : vector<2x128xf32>
    %53 = tpu.matmul %50, %7, %cst_27 {dimension_numbers = #tpu.dot_dimension_numbers<[1], [0], [0], [1], [0, 0, 1, 1], [], []>} : vector<2x32xf32>, vector<32x128xf32>, vector<2x128xf32> -> vector<2x128xf32>
    %54 = arith.addf %52, %53 : vector<2x128xf32>
    %55 = vector.extract_strided_slice %54 {offsets = [0, 0], sizes = [2, 96], strides = [1, 1]} : vector<2x128xf32> to vector<2x96xf32>
    %56 = arith.negf %55 : vector<2x96xf32>
    %57 = math.exp %56 : vector<2x96xf32>
    %cst_28 = arith.constant 1.000000e+00 : f32
    %58 = vector.broadcast %cst_28 : f32 to vector<2x96xf32>
    %59 = arith.addf %58, %57 : vector<2x96xf32>
    %60 = arith.divf %58, %59 : vector<2x96xf32>
    %61 = vector.extract_strided_slice %54 {offsets = [0, 96], sizes = [2, 32], strides = [1, 1]} : vector<2x128xf32> to vector<2x32xf32>
    %62 = math.tanh %61 : vector<2x32xf32>
    %63 = vector.extract_strided_slice %60 {offsets = [0, 0], sizes = [2, 32], strides = [1, 1]} : vector<2x96xf32> to vector<2x32xf32>
    %64 = vector.extract_strided_slice %60 {offsets = [0, 32], sizes = [2, 32], strides = [1, 1]} : vector<2x96xf32> to vector<2x32xf32>
    %65 = vector.extract_strided_slice %60 {offsets = [0, 64], sizes = [2, 32], strides = [1, 1]} : vector<2x96xf32> to vector<2x32xf32>
    %66 = arith.mulf %64, %48 : vector<2x32xf32>
    %67 = arith.mulf %63, %62 : vector<2x32xf32>
    %68 = arith.addf %66, %67 : vector<2x32xf32>
    %69 = math.tanh %68 : vector<2x32xf32>
    %70 = arith.mulf %65, %69 : vector<2x32xf32>
    %c4_29 = arith.constant 4 : index
    %c0_30 = arith.constant 0 : index
    %71 = vector.load %arg16[%c4_29, %c0_30] : memref<16x32xf32, #tpu.memory_space<vmem>>, vector<2x32xf32>
    tpu.vector_store %arg16[%c4_29, %c0_30], %70 {strides = array<i32>} : memref<16x32xf32, #tpu.memory_space<vmem>>, vector<2x32xf32>,
    %c6 = arith.constant 6 : index
    %c0_31 = arith.constant 0 : index
    %72 = vector.load %arg15[%c6, %c0_31] : memref<16x128xf32, #tpu.memory_space<vmem>>, vector<2x128xf32>
    %cst_32 = arith.constant dense<0.000000e+00> : vector<2x128xf32>
    %73 = tpu.matmul %70, %7, %cst_32 {dimension_numbers = #tpu.dot_dimension_numbers<[1], [0], [0], [1], [0, 0, 1, 1], [], []>} : vector<2x32xf32>, vector<32x128xf32>, vector<2x128xf32> -> vector<2x128xf32>
    %74 = arith.addf %72, %73 : vector<2x128xf32>
    %75 = vector.extract_strided_slice %74 {offsets = [0, 0], sizes = [2, 96], strides = [1, 1]} : vector<2x128xf32> to vector<2x96xf32>
    %76 = arith.negf %75 : vector<2x96xf32>
    %77 = math.exp %76 : vector<2x96xf32>
    %cst_33 = arith.constant 1.000000e+00 : f32
    %78 = vector.broadcast %cst_33 : f32 to vector<2x96xf32>
    %79 = arith.addf %78, %77 : vector<2x96xf32>
    %80 = arith.divf %78, %79 : vector<2x96xf32>
    %81 = vector.extract_strided_slice %74 {offsets = [0, 96], sizes = [2, 32], strides = [1, 1]} : vector<2x128xf32> to vector<2x32xf32>
    %82 = math.tanh %81 : vector<2x32xf32>
    %83 = vector.extract_strided_slice %80 {offsets = [0, 0], sizes = [2, 32], strides = [1, 1]} : vector<2x96xf32> to vector<2x32xf32>
    %84 = vector.extract_strided_slice %80 {offsets = [0, 32], sizes = [2, 32], strides = [1, 1]} : vector<2x96xf32> to vector<2x32xf32>
    %85 = vector.extract_strided_slice %80 {offsets = [0, 64], sizes = [2, 32], strides = [1, 1]} : vector<2x96xf32> to vector<2x32xf32>
    %86 = arith.mulf %84, %68 : vector<2x32xf32>
    %87 = arith.mulf %83, %82 : vector<2x32xf32>
    %88 = arith.addf %86, %87 : vector<2x32xf32>
    %89 = math.tanh %88 : vector<2x32xf32>
    %90 = arith.mulf %85, %89 : vector<2x32xf32>
    %c6_34 = arith.constant 6 : index
    %c0_35 = arith.constant 0 : index
    %91 = vector.load %arg16[%c6_34, %c0_35] : memref<16x32xf32, #tpu.memory_space<vmem>>, vector<2x32xf32>
    tpu.vector_store %arg16[%c6_34, %c0_35], %90 {strides = array<i32>} : memref<16x32xf32, #tpu.memory_space<vmem>>, vector<2x32xf32>,
    %c8 = arith.constant 8 : index
    %c0_36 = arith.constant 0 : index
    %92 = vector.load %arg15[%c8, %c0_36] : memref<16x128xf32, #tpu.memory_space<vmem>>, vector<2x128xf32>
    %cst_37 = arith.constant dense<0.000000e+00> : vector<2x128xf32>
    %93 = tpu.matmul %90, %7, %cst_37 {dimension_numbers = #tpu.dot_dimension_numbers<[1], [0], [0], [1], [0, 0, 1, 1], [], []>} : vector<2x32xf32>, vector<32x128xf32>, vector<2x128xf32> -> vector<2x128xf32>
    %94 = arith.addf %92, %93 : vector<2x128xf32>
    %95 = vector.extract_strided_slice %94 {offsets = [0, 0], sizes = [2, 96], strides = [1, 1]} : vector<2x128xf32> to vector<2x96xf32>
    %96 = arith.negf %95 : vector<2x96xf32>
    %97 = math.exp %96 : vector<2x96xf32>
    %cst_38 = arith.constant 1.000000e+00 : f32
    %98 = vector.broadcast %cst_38 : f32 to vector<2x96xf32>
    %99 = arith.addf %98, %97 : vector<2x96xf32>
    %100 = arith.divf %98, %99 : vector<2x96xf32>
    %101 = vector.extract_strided_slice %94 {offsets = [0, 96], sizes = [2, 32], strides = [1, 1]} : vector<2x128xf32> to vector<2x32xf32>
    %102 = math.tanh %101 : vector<2x32xf32>
    %103 = vector.extract_strided_slice %100 {offsets = [0, 0], sizes = [2, 32], strides = [1, 1]} : vector<2x96xf32> to vector<2x32xf32>
    %104 = vector.extract_strided_slice %100 {offsets = [0, 32], sizes = [2, 32], strides = [1, 1]} : vector<2x96xf32> to vector<2x32xf32>
    %105 = vector.extract_strided_slice %100 {offsets = [0, 64], sizes = [2, 32], strides = [1, 1]} : vector<2x96xf32> to vector<2x32xf32>
    %106 = arith.mulf %104, %88 : vector<2x32xf32>
    %107 = arith.mulf %103, %102 : vector<2x32xf32>
    %108 = arith.addf %106, %107 : vector<2x32xf32>
    %109 = math.tanh %108 : vector<2x32xf32>
    %110 = arith.mulf %105, %109 : vector<2x32xf32>
    %c8_39 = arith.constant 8 : index
    %c0_40 = arith.constant 0 : index
    %111 = vector.load %arg16[%c8_39, %c0_40] : memref<16x32xf32, #tpu.memory_space<vmem>>, vector<2x32xf32>
    tpu.vector_store %arg16[%c8_39, %c0_40], %110 {strides = array<i32>} : memref<16x32xf32, #tpu.memory_space<vmem>>, vector<2x32xf32>,
    %c10 = arith.constant 10 : index
    %c0_41 = arith.constant 0 : index
    %112 = vector.load %arg15[%c10, %c0_41] : memref<16x128xf32, #tpu.memory_space<vmem>>, vector<2x128xf32>
    %cst_42 = arith.constant dense<0.000000e+00> : vector<2x128xf32>
    %113 = tpu.matmul %110, %7, %cst_42 {dimension_numbers = #tpu.dot_dimension_numbers<[1], [0], [0], [1], [0, 0, 1, 1], [], []>} : vector<2x32xf32>, vector<32x128xf32>, vector<2x128xf32> -> vector<2x128xf32>
    %114 = arith.addf %112, %113 : vector<2x128xf32>
    %115 = vector.extract_strided_slice %114 {offsets = [0, 0], sizes = [2, 96], strides = [1, 1]} : vector<2x128xf32> to vector<2x96xf32>
    %116 = arith.negf %115 : vector<2x96xf32>
    %117 = math.exp %116 : vector<2x96xf32>
    %cst_43 = arith.constant 1.000000e+00 : f32
    %118 = vector.broadcast %cst_43 : f32 to vector<2x96xf32>
    %119 = arith.addf %118, %117 : vector<2x96xf32>
    %120 = arith.divf %118, %119 : vector<2x96xf32>
    %121 = vector.extract_strided_slice %114 {offsets = [0, 96], sizes = [2, 32], strides = [1, 1]} : vector<2x128xf32> to vector<2x32xf32>
    %122 = math.tanh %121 : vector<2x32xf32>
    %123 = vector.extract_strided_slice %120 {offsets = [0, 0], sizes = [2, 32], strides = [1, 1]} : vector<2x96xf32> to vector<2x32xf32>
    %124 = vector.extract_strided_slice %120 {offsets = [0, 32], sizes = [2, 32], strides = [1, 1]} : vector<2x96xf32> to vector<2x32xf32>
    %125 = vector.extract_strided_slice %120 {offsets = [0, 64], sizes = [2, 32], strides = [1, 1]} : vector<2x96xf32> to vector<2x32xf32>
    %126 = arith.mulf %124, %108 : vector<2x32xf32>
    %127 = arith.mulf %123, %122 : vector<2x32xf32>
    %128 = arith.addf %126, %127 : vector<2x32xf32>
    %129 = math.tanh %128 : vector<2x32xf32>
    %130 = arith.mulf %125, %129 : vector<2x32xf32>
    %c10_44 = arith.constant 10 : index
    %c0_45 = arith.constant 0 : index
    %131 = vector.load %arg16[%c10_44, %c0_45] : memref<16x32xf32, #tpu.memory_space<vmem>>, vector<2x32xf32>
    tpu.vector_store %arg16[%c10_44, %c0_45], %130 {strides = array<i32>} : memref<16x32xf32, #tpu.memory_space<vmem>>, vector<2x32xf32>,
    %c12 = arith.constant 12 : index
    %c0_46 = arith.constant 0 : index
    %132 = vector.load %arg15[%c12, %c0_46] : memref<16x128xf32, #tpu.memory_space<vmem>>, vector<2x128xf32>
    %cst_47 = arith.constant dense<0.000000e+00> : vector<2x128xf32>
    %133 = tpu.matmul %130, %7, %cst_47 {dimension_numbers = #tpu.dot_dimension_numbers<[1], [0], [0], [1], [0, 0, 1, 1], [], []>} : vector<2x32xf32>, vector<32x128xf32>, vector<2x128xf32> -> vector<2x128xf32>
    %134 = arith.addf %132, %133 : vector<2x128xf32>
    %135 = vector.extract_strided_slice %134 {offsets = [0, 0], sizes = [2, 96], strides = [1, 1]} : vector<2x128xf32> to vector<2x96xf32>
    %136 = arith.negf %135 : vector<2x96xf32>
    %137 = math.exp %136 : vector<2x96xf32>
    %cst_48 = arith.constant 1.000000e+00 : f32
    %138 = vector.broadcast %cst_48 : f32 to vector<2x96xf32>
    %139 = arith.addf %138, %137 : vector<2x96xf32>
    %140 = arith.divf %138, %139 : vector<2x96xf32>
    %141 = vector.extract_strided_slice %134 {offsets = [0, 96], sizes = [2, 32], strides = [1, 1]} : vector<2x128xf32> to vector<2x32xf32>
    %142 = math.tanh %141 : vector<2x32xf32>
    %143 = vector.extract_strided_slice %140 {offsets = [0, 0], sizes = [2, 32], strides = [1, 1]} : vector<2x96xf32> to vector<2x32xf32>
    %144 = vector.extract_strided_slice %140 {offsets = [0, 32], sizes = [2, 32], strides = [1, 1]} : vector<2x96xf32> to vector<2x32xf32>
    %145 = vector.extract_strided_slice %140 {offsets = [0, 64], sizes = [2, 32], strides = [1, 1]} : vector<2x96xf32> to vector<2x32xf32>
    %146 = arith.mulf %144, %128 : vector<2x32xf32>
    %147 = arith.mulf %143, %142 : vector<2x32xf32>
    %148 = arith.addf %146, %147 : vector<2x32xf32>
    %149 = math.tanh %148 : vector<2x32xf32>
    %150 = arith.mulf %145, %149 : vector<2x32xf32>
    %c12_49 = arith.constant 12 : index
    %c0_50 = arith.constant 0 : index
    %151 = vector.load %arg16[%c12_49, %c0_50] : memref<16x32xf32, #tpu.memory_space<vmem>>, vector<2x32xf32>
    tpu.vector_store %arg16[%c12_49, %c0_50], %150 {strides = array<i32>} : memref<16x32xf32, #tpu.memory_space<vmem>>, vector<2x32xf32>,
    %c14 = arith.constant 14 : index
    %c0_51 = arith.constant 0 : index
    %152 = vector.load %arg15[%c14, %c0_51] : memref<16x128xf32, #tpu.memory_space<vmem>>, vector<2x128xf32>
    %cst_52 = arith.constant dense<0.000000e+00> : vector<2x128xf32>
    %153 = tpu.matmul %150, %7, %cst_52 {dimension_numbers = #tpu.dot_dimension_numbers<[1], [0], [0], [1], [0, 0, 1, 1], [], []>} : vector<2x32xf32>, vector<32x128xf32>, vector<2x128xf32> -> vector<2x128xf32>
    %154 = arith.addf %152, %153 : vector<2x128xf32>
    %155 = vector.extract_strided_slice %154 {offsets = [0, 0], sizes = [2, 96], strides = [1, 1]} : vector<2x128xf32> to vector<2x96xf32>
    %156 = arith.negf %155 : vector<2x96xf32>
    %157 = math.exp %156 : vector<2x96xf32>
    %cst_53 = arith.constant 1.000000e+00 : f32
    %158 = vector.broadcast %cst_53 : f32 to vector<2x96xf32>
    %159 = arith.addf %158, %157 : vector<2x96xf32>
    %160 = arith.divf %158, %159 : vector<2x96xf32>
    %161 = vector.extract_strided_slice %154 {offsets = [0, 96], sizes = [2, 32], strides = [1, 1]} : vector<2x128xf32> to vector<2x32xf32>
    %162 = math.tanh %161 : vector<2x32xf32>
    %163 = vector.extract_strided_slice %160 {offsets = [0, 0], sizes = [2, 32], strides = [1, 1]} : vector<2x96xf32> to vector<2x32xf32>
    %164 = vector.extract_strided_slice %160 {offsets = [0, 32], sizes = [2, 32], strides = [1, 1]} : vector<2x96xf32> to vector<2x32xf32>
    %165 = vector.extract_strided_slice %160 {offsets = [0, 64], sizes = [2, 32], strides = [1, 1]} : vector<2x96xf32> to vector<2x32xf32>
    %166 = arith.mulf %164, %148 : vector<2x32xf32>
    %167 = arith.mulf %163, %162 : vector<2x32xf32>
    %168 = arith.addf %166, %167 : vector<2x32xf32>
    %169 = math.tanh %168 : vector<2x32xf32>
    %170 = arith.mulf %165, %169 : vector<2x32xf32>
    %c14_54 = arith.constant 14 : index
    %c0_55 = arith.constant 0 : index
    %171 = vector.load %arg16[%c14_54, %c0_55] : memref<16x32xf32, #tpu.memory_space<vmem>>, vector<2x32xf32>
    tpu.vector_store %arg16[%c14_54, %c0_55], %170 {strides = array<i32>} : memref<16x32xf32, #tpu.memory_space<vmem>>, vector<2x32xf32>,
    %c0_56 = arith.constant 0 : index
    %c0_57 = arith.constant 0 : index
    %c0_58 = arith.constant 0 : index
    %172 = vector.load %arg13[%c0_56, %c0_57, %c0_58] : memref<2x2x32xf32, #tpu.memory_space<vmem>>, vector<1x2x32xf32>
    %173 = vector.shape_cast %172 : vector<1x2x32xf32> to vector<2x32xf32>
    %174 = vector.shape_cast %170 : vector<2x32xf32> to vector<1x2x32xf32>
    tpu.vector_store %arg13[%c0_56, %c0_57, %c0_58], %174 {strides = array<i32>} : memref<2x2x32xf32, #tpu.memory_space<vmem>>, vector<1x2x32xf32>,
    %c0_59 = arith.constant 0 : index
    %c0_60 = arith.constant 0 : index
    %c0_61 = arith.constant 0 : index
    %175 = vector.load %arg14[%c0_59, %c0_60, %c0_61] : memref<2x2x32xf32, #tpu.memory_space<vmem>>, vector<1x2x32xf32>
    %176 = vector.shape_cast %175 : vector<1x2x32xf32> to vector<2x32xf32>
    %177 = vector.shape_cast %168 : vector<2x32xf32> to vector<1x2x32xf32>
    tpu.vector_store %arg14[%c0_59, %c0_60, %c0_61], %177 {strides = array<i32>} : memref<2x2x32xf32, #tpu.memory_space<vmem>>, vector<1x2x32xf32>,
    %c0_62 = arith.constant 0 : index
    %c0_63 = arith.constant 0 : index
    %178 = vector.load %arg16[%c0_62, %c0_63] : memref<16x32xf32, #tpu.memory_space<vmem>>, vector<16x32xf32>
    %c0_64 = arith.constant 0 : index
    %c0_65 = arith.constant 0 : index
    %179 = vector.load %arg4[%c0_64, %c0_65] : memref<32x128xf32, #tpu.memory_space<vmem>>, vector<32x128xf32>
    %cst_66 = arith.constant dense<0.000000e+00> : vector<16x128xf32>
    %180 = tpu.matmul %178, %179, %cst_66 {dimension_numbers = #tpu.dot_dimension_numbers<[1], [0], [0], [1], [0, 0, 1, 1], [], []>} : vector<16x32xf32>, vector<32x128xf32>, vector<16x128xf32> -> vector<16x128xf32>
    %c0_67 = arith.constant 0 : index
    %c0_68 = arith.constant 0 : index
    %181 = vector.load %arg6[%c0_67, %c0_68] : memref<1x128xf32, #tpu.memory_space<vmem>>, vector<1x128xf32>
    %182 = vector.broadcast %181 : vector<1x128xf32> to vector<16x128xf32>
    %183 = arith.addf %180, %182 : vector<16x128xf32>
    %c0_69 = arith.constant 0 : index
    %c0_70 = arith.constant 0 : index
    %184 = vector.load %arg15[%c0_69, %c0_70] : memref<16x128xf32, #tpu.memory_space<vmem>>, vector<16x128xf32>
    tpu.vector_store %arg15[%c0_69, %c0_70], %183 {strides = array<i32>} : memref<16x128xf32, #tpu.memory_space<vmem>>, vector<16x128xf32>,
    %c0_71 = arith.constant 0 : index
    %c0_72 = arith.constant 0 : index
    %185 = vector.load %arg5[%c0_71, %c0_72] : memref<32x128xf32, #tpu.memory_space<vmem>>, vector<32x128xf32>
    %c1 = arith.constant 1 : index
    %c0_73 = arith.constant 0 : index
    %c0_74 = arith.constant 0 : index
    %186 = vector.load %arg9[%c1, %c0_73, %c0_74] : memref<2x2x32xf32, #tpu.memory_space<vmem>>, vector<1x2x32xf32>
    %187 = vector.shape_cast %186 : vector<1x2x32xf32> to vector<2x32xf32>
    %c1_75 = arith.constant 1 : index
    %c0_76 = arith.constant 0 : index
    %c0_77 = arith.constant 0 : index
    %188 = vector.load %arg10[%c1_75, %c0_76, %c0_77] : memref<2x2x32xf32, #tpu.memory_space<vmem>>, vector<1x2x32xf32>
    %189 = vector.shape_cast %188 : vector<1x2x32xf32> to vector<2x32xf32>
    %c0_78 = arith.constant 0 : index
    %c0_79 = arith.constant 0 : index
    %190 = vector.load %arg15[%c0_78, %c0_79] : memref<16x128xf32, #tpu.memory_space<vmem>>, vector<2x128xf32>
    %cst_80 = arith.constant dense<0.000000e+00> : vector<2x128xf32>
    %191 = tpu.matmul %187, %185, %cst_80 {dimension_numbers = #tpu.dot_dimension_numbers<[1], [0], [0], [1], [0, 0, 1, 1], [], []>} : vector<2x32xf32>, vector<32x128xf32>, vector<2x128xf32> -> vector<2x128xf32>
    %192 = arith.addf %190, %191 : vector<2x128xf32>
    %193 = vector.extract_strided_slice %192 {offsets = [0, 0], sizes = [2, 96], strides = [1, 1]} : vector<2x128xf32> to vector<2x96xf32>
    %194 = arith.negf %193 : vector<2x96xf32>
    %195 = math.exp %194 : vector<2x96xf32>
    %cst_81 = arith.constant 1.000000e+00 : f32
    %196 = vector.broadcast %cst_81 : f32 to vector<2x96xf32>
    %197 = arith.addf %196, %195 : vector<2x96xf32>
    %198 = arith.divf %196, %197 : vector<2x96xf32>
    %199 = vector.extract_strided_slice %192 {offsets = [0, 96], sizes = [2, 32], strides = [1, 1]} : vector<2x128xf32> to vector<2x32xf32>
    %200 = math.tanh %199 : vector<2x32xf32>
    %201 = vector.extract_strided_slice %198 {offsets = [0, 0], sizes = [2, 32], strides = [1, 1]} : vector<2x96xf32> to vector<2x32xf32>
    %202 = vector.extract_strided_slice %198 {offsets = [0, 32], sizes = [2, 32], strides = [1, 1]} : vector<2x96xf32> to vector<2x32xf32>
    %203 = vector.extract_strided_slice %198 {offsets = [0, 64], sizes = [2, 32], strides = [1, 1]} : vector<2x96xf32> to vector<2x32xf32>
    %204 = arith.mulf %202, %189 : vector<2x32xf32>
    %205 = arith.mulf %201, %200 : vector<2x32xf32>
    %206 = arith.addf %204, %205 : vector<2x32xf32>
    %207 = math.tanh %206 : vector<2x32xf32>
    %208 = arith.mulf %203, %207 : vector<2x32xf32>
    %c0_82 = arith.constant 0 : index
    %c0_83 = arith.constant 0 : index
    %209 = vector.load %arg16[%c0_82, %c0_83] : memref<16x32xf32, #tpu.memory_space<vmem>>, vector<2x32xf32>
    tpu.vector_store %arg16[%c0_82, %c0_83], %208 {strides = array<i32>} : memref<16x32xf32, #tpu.memory_space<vmem>>, vector<2x32xf32>,
    %c2_84 = arith.constant 2 : index
    %c0_85 = arith.constant 0 : index
    %210 = vector.load %arg15[%c2_84, %c0_85] : memref<16x128xf32, #tpu.memory_space<vmem>>, vector<2x128xf32>
    %cst_86 = arith.constant dense<0.000000e+00> : vector<2x128xf32>
    %211 = tpu.matmul %208, %185, %cst_86 {dimension_numbers = #tpu.dot_dimension_numbers<[1], [0], [0], [1], [0, 0, 1, 1], [], []>} : vector<2x32xf32>, vector<32x128xf32>, vector<2x128xf32> -> vector<2x128xf32>
    %212 = arith.addf %210, %211 : vector<2x128xf32>
    %213 = vector.extract_strided_slice %212 {offsets = [0, 0], sizes = [2, 96], strides = [1, 1]} : vector<2x128xf32> to vector<2x96xf32>
    %214 = arith.negf %213 : vector<2x96xf32>
    %215 = math.exp %214 : vector<2x96xf32>
    %cst_87 = arith.constant 1.000000e+00 : f32
    %216 = vector.broadcast %cst_87 : f32 to vector<2x96xf32>
    %217 = arith.addf %216, %215 : vector<2x96xf32>
    %218 = arith.divf %216, %217 : vector<2x96xf32>
    %219 = vector.extract_strided_slice %212 {offsets = [0, 96], sizes = [2, 32], strides = [1, 1]} : vector<2x128xf32> to vector<2x32xf32>
    %220 = math.tanh %219 : vector<2x32xf32>
    %221 = vector.extract_strided_slice %218 {offsets = [0, 0], sizes = [2, 32], strides = [1, 1]} : vector<2x96xf32> to vector<2x32xf32>
    %222 = vector.extract_strided_slice %218 {offsets = [0, 32], sizes = [2, 32], strides = [1, 1]} : vector<2x96xf32> to vector<2x32xf32>
    %223 = vector.extract_strided_slice %218 {offsets = [0, 64], sizes = [2, 32], strides = [1, 1]} : vector<2x96xf32> to vector<2x32xf32>
    %224 = arith.mulf %222, %206 : vector<2x32xf32>
    %225 = arith.mulf %221, %220 : vector<2x32xf32>
    %226 = arith.addf %224, %225 : vector<2x32xf32>
    %227 = math.tanh %226 : vector<2x32xf32>
    %228 = arith.mulf %223, %227 : vector<2x32xf32>
    %c2_88 = arith.constant 2 : index
    %c0_89 = arith.constant 0 : index
    %229 = vector.load %arg16[%c2_88, %c0_89] : memref<16x32xf32, #tpu.memory_space<vmem>>, vector<2x32xf32>
    tpu.vector_store %arg16[%c2_88, %c0_89], %228 {strides = array<i32>} : memref<16x32xf32, #tpu.memory_space<vmem>>, vector<2x32xf32>,
    %c4_90 = arith.constant 4 : index
    %c0_91 = arith.constant 0 : index
    %230 = vector.load %arg15[%c4_90, %c0_91] : memref<16x128xf32, #tpu.memory_space<vmem>>, vector<2x128xf32>
    %cst_92 = arith.constant dense<0.000000e+00> : vector<2x128xf32>
    %231 = tpu.matmul %228, %185, %cst_92 {dimension_numbers = #tpu.dot_dimension_numbers<[1], [0], [0], [1], [0, 0, 1, 1], [], []>} : vector<2x32xf32>, vector<32x128xf32>, vector<2x128xf32> -> vector<2x128xf32>
    %232 = arith.addf %230, %231 : vector<2x128xf32>
    %233 = vector.extract_strided_slice %232 {offsets = [0, 0], sizes = [2, 96], strides = [1, 1]} : vector<2x128xf32> to vector<2x96xf32>
    %234 = arith.negf %233 : vector<2x96xf32>
    %235 = math.exp %234 : vector<2x96xf32>
    %cst_93 = arith.constant 1.000000e+00 : f32
    %236 = vector.broadcast %cst_93 : f32 to vector<2x96xf32>
    %237 = arith.addf %236, %235 : vector<2x96xf32>
    %238 = arith.divf %236, %237 : vector<2x96xf32>
    %239 = vector.extract_strided_slice %232 {offsets = [0, 96], sizes = [2, 32], strides = [1, 1]} : vector<2x128xf32> to vector<2x32xf32>
    %240 = math.tanh %239 : vector<2x32xf32>
    %241 = vector.extract_strided_slice %238 {offsets = [0, 0], sizes = [2, 32], strides = [1, 1]} : vector<2x96xf32> to vector<2x32xf32>
    %242 = vector.extract_strided_slice %238 {offsets = [0, 32], sizes = [2, 32], strides = [1, 1]} : vector<2x96xf32> to vector<2x32xf32>
    %243 = vector.extract_strided_slice %238 {offsets = [0, 64], sizes = [2, 32], strides = [1, 1]} : vector<2x96xf32> to vector<2x32xf32>
    %244 = arith.mulf %242, %226 : vector<2x32xf32>
    %245 = arith.mulf %241, %240 : vector<2x32xf32>
    %246 = arith.addf %244, %245 : vector<2x32xf32>
    %247 = math.tanh %246 : vector<2x32xf32>
    %248 = arith.mulf %243, %247 : vector<2x32xf32>
    %c4_94 = arith.constant 4 : index
    %c0_95 = arith.constant 0 : index
    %249 = vector.load %arg16[%c4_94, %c0_95] : memref<16x32xf32, #tpu.memory_space<vmem>>, vector<2x32xf32>
    tpu.vector_store %arg16[%c4_94, %c0_95], %248 {strides = array<i32>} : memref<16x32xf32, #tpu.memory_space<vmem>>, vector<2x32xf32>,
    %c6_96 = arith.constant 6 : index
    %c0_97 = arith.constant 0 : index
    %250 = vector.load %arg15[%c6_96, %c0_97] : memref<16x128xf32, #tpu.memory_space<vmem>>, vector<2x128xf32>
    %cst_98 = arith.constant dense<0.000000e+00> : vector<2x128xf32>
    %251 = tpu.matmul %248, %185, %cst_98 {dimension_numbers = #tpu.dot_dimension_numbers<[1], [0], [0], [1], [0, 0, 1, 1], [], []>} : vector<2x32xf32>, vector<32x128xf32>, vector<2x128xf32> -> vector<2x128xf32>
    %252 = arith.addf %250, %251 : vector<2x128xf32>
    %253 = vector.extract_strided_slice %252 {offsets = [0, 0], sizes = [2, 96], strides = [1, 1]} : vector<2x128xf32> to vector<2x96xf32>
    %254 = arith.negf %253 : vector<2x96xf32>
    %255 = math.exp %254 : vector<2x96xf32>
    %cst_99 = arith.constant 1.000000e+00 : f32
    %256 = vector.broadcast %cst_99 : f32 to vector<2x96xf32>
    %257 = arith.addf %256, %255 : vector<2x96xf32>
    %258 = arith.divf %256, %257 : vector<2x96xf32>
    %259 = vector.extract_strided_slice %252 {offsets = [0, 96], sizes = [2, 32], strides = [1, 1]} : vector<2x128xf32> to vector<2x32xf32>
    %260 = math.tanh %259 : vector<2x32xf32>
    %261 = vector.extract_strided_slice %258 {offsets = [0, 0], sizes = [2, 32], strides = [1, 1]} : vector<2x96xf32> to vector<2x32xf32>
    %262 = vector.extract_strided_slice %258 {offsets = [0, 32], sizes = [2, 32], strides = [1, 1]} : vector<2x96xf32> to vector<2x32xf32>
    %263 = vector.extract_strided_slice %258 {offsets = [0, 64], sizes = [2, 32], strides = [1, 1]} : vector<2x96xf32> to vector<2x32xf32>
    %264 = arith.mulf %262, %246 : vector<2x32xf32>
    %265 = arith.mulf %261, %260 : vector<2x32xf32>
    %266 = arith.addf %264, %265 : vector<2x32xf32>
    %267 = math.tanh %266 : vector<2x32xf32>
    %268 = arith.mulf %263, %267 : vector<2x32xf32>
    %c6_100 = arith.constant 6 : index
    %c0_101 = arith.constant 0 : index
    %269 = vector.load %arg16[%c6_100, %c0_101] : memref<16x32xf32, #tpu.memory_space<vmem>>, vector<2x32xf32>
    tpu.vector_store %arg16[%c6_100, %c0_101], %268 {strides = array<i32>} : memref<16x32xf32, #tpu.memory_space<vmem>>, vector<2x32xf32>,
    %c8_102 = arith.constant 8 : index
    %c0_103 = arith.constant 0 : index
    %270 = vector.load %arg15[%c8_102, %c0_103] : memref<16x128xf32, #tpu.memory_space<vmem>>, vector<2x128xf32>
    %cst_104 = arith.constant dense<0.000000e+00> : vector<2x128xf32>
    %271 = tpu.matmul %268, %185, %cst_104 {dimension_numbers = #tpu.dot_dimension_numbers<[1], [0], [0], [1], [0, 0, 1, 1], [], []>} : vector<2x32xf32>, vector<32x128xf32>, vector<2x128xf32> -> vector<2x128xf32>
    %272 = arith.addf %270, %271 : vector<2x128xf32>
    %273 = vector.extract_strided_slice %272 {offsets = [0, 0], sizes = [2, 96], strides = [1, 1]} : vector<2x128xf32> to vector<2x96xf32>
    %274 = arith.negf %273 : vector<2x96xf32>
    %275 = math.exp %274 : vector<2x96xf32>
    %cst_105 = arith.constant 1.000000e+00 : f32
    %276 = vector.broadcast %cst_105 : f32 to vector<2x96xf32>
    %277 = arith.addf %276, %275 : vector<2x96xf32>
    %278 = arith.divf %276, %277 : vector<2x96xf32>
    %279 = vector.extract_strided_slice %272 {offsets = [0, 96], sizes = [2, 32], strides = [1, 1]} : vector<2x128xf32> to vector<2x32xf32>
    %280 = math.tanh %279 : vector<2x32xf32>
    %281 = vector.extract_strided_slice %278 {offsets = [0, 0], sizes = [2, 32], strides = [1, 1]} : vector<2x96xf32> to vector<2x32xf32>
    %282 = vector.extract_strided_slice %278 {offsets = [0, 32], sizes = [2, 32], strides = [1, 1]} : vector<2x96xf32> to vector<2x32xf32>
    %283 = vector.extract_strided_slice %278 {offsets = [0, 64], sizes = [2, 32], strides = [1, 1]} : vector<2x96xf32> to vector<2x32xf32>
    %284 = arith.mulf %282, %266 : vector<2x32xf32>
    %285 = arith.mulf %281, %280 : vector<2x32xf32>
    %286 = arith.addf %284, %285 : vector<2x32xf32>
    %287 = math.tanh %286 : vector<2x32xf32>
    %288 = arith.mulf %283, %287 : vector<2x32xf32>
    %c8_106 = arith.constant 8 : index
    %c0_107 = arith.constant 0 : index
    %289 = vector.load %arg16[%c8_106, %c0_107] : memref<16x32xf32, #tpu.memory_space<vmem>>, vector<2x32xf32>
    tpu.vector_store %arg16[%c8_106, %c0_107], %288 {strides = array<i32>} : memref<16x32xf32, #tpu.memory_space<vmem>>, vector<2x32xf32>,
    %c10_108 = arith.constant 10 : index
    %c0_109 = arith.constant 0 : index
    %290 = vector.load %arg15[%c10_108, %c0_109] : memref<16x128xf32, #tpu.memory_space<vmem>>, vector<2x128xf32>
    %cst_110 = arith.constant dense<0.000000e+00> : vector<2x128xf32>
    %291 = tpu.matmul %288, %185, %cst_110 {dimension_numbers = #tpu.dot_dimension_numbers<[1], [0], [0], [1], [0, 0, 1, 1], [], []>} : vector<2x32xf32>, vector<32x128xf32>, vector<2x128xf32> -> vector<2x128xf32>
    %292 = arith.addf %290, %291 : vector<2x128xf32>
    %293 = vector.extract_strided_slice %292 {offsets = [0, 0], sizes = [2, 96], strides = [1, 1]} : vector<2x128xf32> to vector<2x96xf32>
    %294 = arith.negf %293 : vector<2x96xf32>
    %295 = math.exp %294 : vector<2x96xf32>
    %cst_111 = arith.constant 1.000000e+00 : f32
    %296 = vector.broadcast %cst_111 : f32 to vector<2x96xf32>
    %297 = arith.addf %296, %295 : vector<2x96xf32>
    %298 = arith.divf %296, %297 : vector<2x96xf32>
    %299 = vector.extract_strided_slice %292 {offsets = [0, 96], sizes = [2, 32], strides = [1, 1]} : vector<2x128xf32> to vector<2x32xf32>
    %300 = math.tanh %299 : vector<2x32xf32>
    %301 = vector.extract_strided_slice %298 {offsets = [0, 0], sizes = [2, 32], strides = [1, 1]} : vector<2x96xf32> to vector<2x32xf32>
    %302 = vector.extract_strided_slice %298 {offsets = [0, 32], sizes = [2, 32], strides = [1, 1]} : vector<2x96xf32> to vector<2x32xf32>
    %303 = vector.extract_strided_slice %298 {offsets = [0, 64], sizes = [2, 32], strides = [1, 1]} : vector<2x96xf32> to vector<2x32xf32>
    %304 = arith.mulf %302, %286 : vector<2x32xf32>
    %305 = arith.mulf %301, %300 : vector<2x32xf32>
    %306 = arith.addf %304, %305 : vector<2x32xf32>
    %307 = math.tanh %306 : vector<2x32xf32>
    %308 = arith.mulf %303, %307 : vector<2x32xf32>
    %c10_112 = arith.constant 10 : index
    %c0_113 = arith.constant 0 : index
    %309 = vector.load %arg16[%c10_112, %c0_113] : memref<16x32xf32, #tpu.memory_space<vmem>>, vector<2x32xf32>
    tpu.vector_store %arg16[%c10_112, %c0_113], %308 {strides = array<i32>} : memref<16x32xf32, #tpu.memory_space<vmem>>, vector<2x32xf32>,
    %c12_114 = arith.constant 12 : index
    %c0_115 = arith.constant 0 : index
    %310 = vector.load %arg15[%c12_114, %c0_115] : memref<16x128xf32, #tpu.memory_space<vmem>>, vector<2x128xf32>
    %cst_116 = arith.constant dense<0.000000e+00> : vector<2x128xf32>
    %311 = tpu.matmul %308, %185, %cst_116 {dimension_numbers = #tpu.dot_dimension_numbers<[1], [0], [0], [1], [0, 0, 1, 1], [], []>} : vector<2x32xf32>, vector<32x128xf32>, vector<2x128xf32> -> vector<2x128xf32>
    %312 = arith.addf %310, %311 : vector<2x128xf32>
    %313 = vector.extract_strided_slice %312 {offsets = [0, 0], sizes = [2, 96], strides = [1, 1]} : vector<2x128xf32> to vector<2x96xf32>
    %314 = arith.negf %313 : vector<2x96xf32>
    %315 = math.exp %314 : vector<2x96xf32>
    %cst_117 = arith.constant 1.000000e+00 : f32
    %316 = vector.broadcast %cst_117 : f32 to vector<2x96xf32>
    %317 = arith.addf %316, %315 : vector<2x96xf32>
    %318 = arith.divf %316, %317 : vector<2x96xf32>
    %319 = vector.extract_strided_slice %312 {offsets = [0, 96], sizes = [2, 32], strides = [1, 1]} : vector<2x128xf32> to vector<2x32xf32>
    %320 = math.tanh %319 : vector<2x32xf32>
    %321 = vector.extract_strided_slice %318 {offsets = [0, 0], sizes = [2, 32], strides = [1, 1]} : vector<2x96xf32> to vector<2x32xf32>
    %322 = vector.extract_strided_slice %318 {offsets = [0, 32], sizes = [2, 32], strides = [1, 1]} : vector<2x96xf32> to vector<2x32xf32>
    %323 = vector.extract_strided_slice %318 {offsets = [0, 64], sizes = [2, 32], strides = [1, 1]} : vector<2x96xf32> to vector<2x32xf32>
    %324 = arith.mulf %322, %306 : vector<2x32xf32>
    %325 = arith.mulf %321, %320 : vector<2x32xf32>
    %326 = arith.addf %324, %325 : vector<2x32xf32>
    %327 = math.tanh %326 : vector<2x32xf32>
    %328 = arith.mulf %323, %327 : vector<2x32xf32>
    %c12_118 = arith.constant 12 : index
    %c0_119 = arith.constant 0 : index
    %329 = vector.load %arg16[%c12_118, %c0_119] : memref<16x32xf32, #tpu.memory_space<vmem>>, vector<2x32xf32>
    tpu.vector_store %arg16[%c12_118, %c0_119], %328 {strides = array<i32>} : memref<16x32xf32, #tpu.memory_space<vmem>>, vector<2x32xf32>,
    %c14_120 = arith.constant 14 : index
    %c0_121 = arith.constant 0 : index
    %330 = vector.load %arg15[%c14_120, %c0_121] : memref<16x128xf32, #tpu.memory_space<vmem>>, vector<2x128xf32>
    %cst_122 = arith.constant dense<0.000000e+00> : vector<2x128xf32>
    %331 = tpu.matmul %328, %185, %cst_122 {dimension_numbers = #tpu.dot_dimension_numbers<[1], [0], [0], [1], [0, 0, 1, 1], [], []>} : vector<2x32xf32>, vector<32x128xf32>, vector<2x128xf32> -> vector<2x128xf32>
    %332 = arith.addf %330, %331 : vector<2x128xf32>
    %333 = vector.extract_strided_slice %332 {offsets = [0, 0], sizes = [2, 96], strides = [1, 1]} : vector<2x128xf32> to vector<2x96xf32>
    %334 = arith.negf %333 : vector<2x96xf32>
    %335 = math.exp %334 : vector<2x96xf32>
    %cst_123 = arith.constant 1.000000e+00 : f32
    %336 = vector.broadcast %cst_123 : f32 to vector<2x96xf32>
    %337 = arith.addf %336, %335 : vector<2x96xf32>
    %338 = arith.divf %336, %337 : vector<2x96xf32>
    %339 = vector.extract_strided_slice %332 {offsets = [0, 96], sizes = [2, 32], strides = [1, 1]} : vector<2x128xf32> to vector<2x32xf32>
    %340 = math.tanh %339 : vector<2x32xf32>
    %341 = vector.extract_strided_slice %338 {offsets = [0, 0], sizes = [2, 32], strides = [1, 1]} : vector<2x96xf32> to vector<2x32xf32>
    %342 = vector.extract_strided_slice %338 {offsets = [0, 32], sizes = [2, 32], strides = [1, 1]} : vector<2x96xf32> to vector<2x32xf32>
    %343 = vector.extract_strided_slice %338 {offsets = [0, 64], sizes = [2, 32], strides = [1, 1]} : vector<2x96xf32> to vector<2x32xf32>
    %344 = arith.mulf %342, %326 : vector<2x32xf32>
    %345 = arith.mulf %341, %340 : vector<2x32xf32>
    %346 = arith.addf %344, %345 : vector<2x32xf32>
    %347 = math.tanh %346 : vector<2x32xf32>
    %348 = arith.mulf %343, %347 : vector<2x32xf32>
    %c14_124 = arith.constant 14 : index
    %c0_125 = arith.constant 0 : index
    %349 = vector.load %arg16[%c14_124, %c0_125] : memref<16x32xf32, #tpu.memory_space<vmem>>, vector<2x32xf32>
    tpu.vector_store %arg16[%c14_124, %c0_125], %348 {strides = array<i32>} : memref<16x32xf32, #tpu.memory_space<vmem>>, vector<2x32xf32>,
    %c1_126 = arith.constant 1 : index
    %c0_127 = arith.constant 0 : index
    %c0_128 = arith.constant 0 : index
    %350 = vector.load %arg13[%c1_126, %c0_127, %c0_128] : memref<2x2x32xf32, #tpu.memory_space<vmem>>, vector<1x2x32xf32>
    %351 = vector.shape_cast %350 : vector<1x2x32xf32> to vector<2x32xf32>
    %352 = vector.shape_cast %348 : vector<2x32xf32> to vector<1x2x32xf32>
    tpu.vector_store %arg13[%c1_126, %c0_127, %c0_128], %352 {strides = array<i32>} : memref<2x2x32xf32, #tpu.memory_space<vmem>>, vector<1x2x32xf32>,
    %c1_129 = arith.constant 1 : index
    %c0_130 = arith.constant 0 : index
    %c0_131 = arith.constant 0 : index
    %353 = vector.load %arg14[%c1_129, %c0_130, %c0_131] : memref<2x2x32xf32, #tpu.memory_space<vmem>>, vector<1x2x32xf32>
    %354 = vector.shape_cast %353 : vector<1x2x32xf32> to vector<2x32xf32>
    %355 = vector.shape_cast %346 : vector<2x32xf32> to vector<1x2x32xf32>
    tpu.vector_store %arg14[%c1_129, %c0_130, %c0_131], %355 {strides = array<i32>} : memref<2x2x32xf32, #tpu.memory_space<vmem>>, vector<1x2x32xf32>,
    %c0_132 = arith.constant 0 : index
    %c0_133 = arith.constant 0 : index
    %356 = vector.load %arg16[%c0_132, %c0_133] : memref<16x32xf32, #tpu.memory_space<vmem>>, vector<16x32xf32>
    %c0_134 = arith.constant 0 : index
    %c0_135 = arith.constant 0 : index
    %357 = vector.load %arg12[%c0_134, %c0_135] : memref<16x32xf32, #tpu.memory_space<vmem>>, vector<16x32xf32>
    tpu.vector_store %arg12[%c0_134, %c0_135], %356 {strides = array<i32>} : memref<16x32xf32, #tpu.memory_space<vmem>>, vector<16x32xf32>,
    %c0_136 = arith.constant 0 : index
    %c0_137 = arith.constant 0 : index
    %358 = vector.load %arg7[%c0_136, %c0_137] : memref<32x3xf32, #tpu.memory_space<vmem>>, vector<32x3xf32>
    %cst_138 = arith.constant dense<0.000000e+00> : vector<16x3xf32>
    %359 = tpu.matmul %356, %358, %cst_138 {dimension_numbers = #tpu.dot_dimension_numbers<[1], [0], [0], [1], [0, 0, 1, 1], [], []>} : vector<16x32xf32>, vector<32x3xf32>, vector<16x3xf32> -> vector<16x3xf32>
    %c0_139 = arith.constant 0 : index
    %c0_140 = arith.constant 0 : index
    %360 = vector.load %arg8[%c0_139, %c0_140] : memref<1x3xf32, #tpu.memory_space<vmem>>, vector<1x3xf32>
    %361 = vector.broadcast %360 : vector<1x3xf32> to vector<16x3xf32>
    %362 = arith.addf %359, %361 : vector<16x3xf32>
    %363 = arith.negf %362 : vector<16x3xf32>
    %364 = math.exp %363 : vector<16x3xf32>
    %cst_141 = arith.constant 1.000000e+00 : f32
    %365 = vector.broadcast %cst_141 : f32 to vector<16x3xf32>
    %366 = arith.addf %365, %364 : vector<16x3xf32>
    %367 = arith.divf %365, %366 : vector<16x3xf32>
    %c0_142 = arith.constant 0 : index
    %c0_143 = arith.constant 0 : index
    %368 = vector.load %arg11[%c0_142, %c0_143] : memref<16x3xf32, #tpu.memory_space<vmem>>, vector<16x3xf32>
    tpu.vector_store %arg11[%c0_142, %c0_143], %367 {strides = array<i32>} : memref<16x3xf32, #tpu.memory_space<vmem>>, vector<16x3xf32>,
    return
  }
}

</mosaic_0001>

<llo_original>
// kernel: _lambda_.1
$region0: #{_lambda_.1}
  #allocation0 [shape = 'u32[]', space=smem, size = 0x4, offset = 0x4, fixed_abs, tag = 'smem constant byte address 0x4 - core index']
  #allocation1 [shape = 'u32[144,128]{1,0:T(1,128)}', space=vmem, size = 0x12000, scoped, tag = 'internal scratch']
  #allocation2 [shape = 'f32[16,128]{1,0:T(8,128)}', space=vmem, size = 0x2000, scoped, tag = 'scratch operand']
  #allocation3 [shape = 'f32[16,32]{1,0:T(8,128)}', space=vmem, size = 0x2000, scoped, tag = 'scratch operand']
  %s0 = inlined_call_operand.vmem [shape: f32[16,8], index: 0, kind: input, shape index: {}]
  %s1 = inlined_call_operand.hbm [shape: f32[8,128], index: 1, kind: input, shape index: {}]
  %s2 = inlined_call_operand.hbm [shape: f32[32,128], index: 2, kind: input, shape index: {}]
  %s3 = inlined_call_operand.hbm [shape: f32[1,128], index: 3, kind: input, shape index: {}]
  %s4 = inlined_call_operand.hbm [shape: f32[32,128], index: 4, kind: input, shape index: {}]
  %s5 = inlined_call_operand.vmem [shape: f32[32,128], index: 5, kind: input, shape index: {}]
  %s6 = inlined_call_operand.vmem [shape: f32[1,128], index: 6, kind: input, shape index: {}]
  %s7 = inlined_call_operand.vmem [shape: f32[32,3], index: 7, kind: input, shape index: {}]
  %s8 = inlined_call_operand.vmem [shape: f32[1,3], index: 8, kind: input, shape index: {}]
  %s9 = inlined_call_operand.hbm [shape: f32[2,2,32], index: 9, kind: input, shape index: {}]
  %s10 = inlined_call_operand.hbm [shape: f32[2,2,32], index: 10, kind: input, shape index: {}]
  %s11 = inlined_call_operand.vmem [shape: f32[16,3], index: 11, kind: output, shape index: {0}]
  %s12 = inlined_call_operand.vmem [shape: f32[16,32], index: 12, kind: output, shape index: {1}]
  %s13 = inlined_call_operand.hbm [shape: f32[2,2,32], index: 13, kind: output, shape index: {2}]
  %s14 = inlined_call_operand.hbm [shape: f32[2,2,32], index: 14, kind: output, shape index: {3}]
  %15 = xla_tuple %s11, %s12, %s13, %s14
  %s16 = sld [smem:[#allocation0]]
  $region102: #{_lambda_.1} parent=0
    _
  %s18 = ssub.s32 1, %s16
  %s19 = scalar_select 0, %s18, %s16
  $region1: #{_lambda_.1} parent=0
    #allocation4 [shape = 'u8[4096]{0}', space=vmem, size = 0x1000, scoped, tag = 'input window, operand 1, single buffered']
    #allocation5 [shape = 's32[1]{0}', space=sflag, size = 0x4, scoped, tag = 'scoped memory for _lambda_.1']
    #allocation6 [shape = 's32[1]{0}', space=sflag, size = 0x4, scoped, tag = 'scoped memory for _lambda_.1']
    #allocation7 [shape = 'u8[16384]{0}', space=vmem, size = 0x4000, scoped, tag = 'input window, operand 2, single buffered']
    #allocation8 [shape = 's32[1]{0}', space=sflag, size = 0x4, scoped, tag = 'scoped memory for _lambda_.1']
    #allocation9 [shape = 'u8[512]{0}', space=vmem, size = 0x400, scoped, tag = 'input window, operand 3, single buffered']
    #allocation10 [shape = 'u8[16384]{0}', space=vmem, size = 0x4000, scoped, tag = 'input window, operand 4, single buffered']
    #allocation11 [shape = 's32[1]{0}', space=sflag, size = 0x4, scoped, tag = 'scoped memory for _lambda_.1']
    #allocation12 [shape = 'u8[2048]{0}', space=vmem, size = 0x800, scoped, tag = 'input window, operand 9, single buffered']
    #allocation13 [shape = 'u8[2048]{0}', space=vmem, size = 0x800, scoped, tag = 'input window, operand 10, single buffered']
    #allocation14 [shape = 's32[1]{0}', space=sflag, size = 0x4, scoped, tag = 'scoped memory for _lambda_.1']
    #allocation15 [shape = 'u8[2048]{0}', space=vmem, size = 0x800, scoped, tag = 'output window, operand 2, single buffered']
    #allocation16 [shape = 'u8[2048]{0}', space=vmem, size = 0x800, scoped, tag = 'output window, operand 3, single buffered']
    #allocation17 [shape = 's32[1]{0}', space=sflag, size = 0x4, scoped, tag = 'scoped memory for _lambda_.1']
    %20 = vsyncpa [#allocation5], 0
    %21 = vsyncpa [#allocation8], 0
    %22 = vsyncpa [#allocation11], 0
    %23 = vsyncpa [#allocation14], 0
    %24 = vsyncpa [#allocation6], 0
    %25 = vsyncpa [#allocation17], 0
    // Predicated region
    $region2: #{_lambda_.1} parent=1 // pred_check
      _
    $region3: #{_lambda_.1} parent=1 // pred_check_branch
      %27 = sbr.rel (0) target = $region5
    $region4: #{_lambda_.1} parent=1 // pred_region
      _
    $region5: #{_lambda_.1} parent=1 // pred_fallthru
      _
    // Predicated region
    $region6: #{_lambda_.1} parent=1 // pred_check
      _
    $region7: #{_lambda_.1} parent=1 // pred_check_branch
      %29 = sbr.rel (0) target = $region9
    $region8: #{_lambda_.1} parent=1 // pred_region
      %s31 = ssub.s32 128, 128
      %32 = vsyncadd [#allocation5], %s31
      %s34 = sshll.u32 [#allocation4], 4
      %s35 = int_to_ptr.vmem [resolvable:$true] %s34
      %37 = dma.hbm_to_vmem [thread:$0]  %s1, 128, %s35, [#allocation5]
    $region9: #{_lambda_.1} parent=1 // pred_fallthru
      _
    // Predicated region
    $region10: #{_lambda_.1} parent=1 // pred_check
      _
    $region11: #{_lambda_.1} parent=1 // pred_check_branch
      %39 = sbr.rel (0) target = $region13
    $region12: #{_lambda_.1} parent=1 // pred_region
      %s41 = ssub.s32 512, 512
      %42 = vsyncadd [#allocation8], %s41
      %s43 = sshll.u32 [#allocation7], 4
      %s44 = int_to_ptr.vmem [resolvable:$true] %s43
      %49 = dma.hbm_to_vmem [thread:$0]  %s2, 512, %s44, [#allocation8], 128, 128, 8
    $region13: #{_lambda_.1} parent=1 // pred_fallthru
      _
    // Predicated region
    $region14: #{_lambda_.1} parent=1 // pred_check
      _
    $region15: #{_lambda_.1} parent=1 // pred_check_branch
      %51 = sbr.rel (0) target = $region17
    $region16: #{_lambda_.1} parent=1 // pred_region
      %s53 = ssub.s32 16, 16
      %54 = vsyncadd [#allocation8], %s53
      %s56 = sshll.u32 [#allocation9], 4
      %s57 = int_to_ptr.vmem [resolvable:$true] %s56
      %59 = dma.hbm_to_vmem [thread:$0]  %s3, 16, %s57, [#allocation8]
    $region17: #{_lambda_.1} parent=1 // pred_fallthru
      _
    // Predicated region
    $region18: #{_lambda_.1} parent=1 // pred_check
      _
    $region19: #{_lambda_.1} parent=1 // pred_check_branch
      %61 = sbr.rel (0) target = $region21
    $region20: #{_lambda_.1} parent=1 // pred_region
      %s63 = ssub.s32 512, 512
      %64 = vsyncadd [#allocation11], %s63
      %s65 = sshll.u32 [#allocation10], 4
      %s66 = int_to_ptr.vmem [resolvable:$true] %s65
      %71 = dma.hbm_to_vmem [thread:$0]  %s4, 512, %s66, [#allocation11], 128, 128, 8
    $region21: #{_lambda_.1} parent=1 // pred_fallthru
      _
    // Predicated region
    $region22: #{_lambda_.1} parent=1 // pred_check
      _
    $region23: #{_lambda_.1} parent=1 // pred_check_branch
      %73 = sbr.rel (0) target = $region25
    $region24: #{_lambda_.1} parent=1 // pred_region
      _
    $region25: #{_lambda_.1} parent=1 // pred_fallthru
      _
    // Predicated region
    $region26: #{_lambda_.1} parent=1 // pred_check
      _
    $region27: #{_lambda_.1} parent=1 // pred_check_branch
      %75 = sbr.rel (0) target = $region29
    $region28: #{_lambda_.1} parent=1 // pred_region
      _
    $region29: #{_lambda_.1} parent=1 // pred_fallthru
      _
    // Predicated region
    $region30: #{_lambda_.1} parent=1 // pred_check
      _
    $region31: #{_lambda_.1} parent=1 // pred_check_branch
      %77 = sbr.rel (0) target = $region33
    $region32: #{_lambda_.1} parent=1 // pred_region
      _
    $region33: #{_lambda_.1} parent=1 // pred_fallthru
      _
    // Predicated region
    $region34: #{_lambda_.1} parent=1 // pred_check
      _
    $region35: #{_lambda_.1} parent=1 // pred_check_branch
      %79 = sbr.rel (0) target = $region37
    $region36: #{_lambda_.1} parent=1 // pred_region
      _
    $region37: #{_lambda_.1} parent=1 // pred_fallthru
      _
    // Predicated region
    $region38: #{_lambda_.1} parent=1 // pred_check
      _
    $region39: #{_lambda_.1} parent=1 // pred_check_branch
      %81 = sbr.rel (0) target = $region41
    $region40: #{_lambda_.1} parent=1 // pred_region
      %s83 = ssub.s32 64, 64
      %84 = vsyncadd [#allocation11], %s83
      %s85 = sshll.u32 [#allocation12], 4
      %s86 = int_to_ptr.vmem [resolvable:$true] %s85
      %91 = dma.hbm_to_vmem [thread:$0]  %s9, 64, %s86, [#allocation11], 32, 32, 2
    $region41: #{_lambda_.1} parent=1 // pred_fallthru
      _
    // Predicated region
    $region42: #{_lambda_.1} parent=1 // pred_check
      _
    $region43: #{_lambda_.1} parent=1 // pred_check_branch
      %93 = sbr.rel (0) target = $region45
    $region44: #{_lambda_.1} parent=1 // pred_region
      %s95 = ssub.s32 64, 64
      %96 = vsyncadd [#allocation14], %s95
      %s97 = sshll.u32 [#allocation13], 4
      %s98 = int_to_ptr.vmem [resolvable:$true] %s97
      %103 = dma.hbm_to_vmem [thread:$0]  %s10, 64, %s98, [#allocation14], 32, 32, 2
    $region45: #{_lambda_.1} parent=1 // pred_fallthru
      _
    // Predicated region
    $region46: #{_lambda_.1} parent=1 // pred_check
      _
    $region47: #{_lambda_.1} parent=1 // pred_check_branch
      %105 = sbr.rel (0) target = $region49
    $region48: #{_lambda_.1} parent=1 // pred_region
      %106 = dma.done [#allocation5], 128
    $region49: #{_lambda_.1} parent=1 // pred_fallthru
      _
    // Predicated region
    $region50: #{_lambda_.1} parent=1 // pred_check
      _
    $region51: #{_lambda_.1} parent=1 // pred_check_branch
      %108 = sbr.rel (0) target = $region53
    $region52: #{_lambda_.1} parent=1 // pred_region
      %109 = dma.done [#allocation8], 512
    $region53: #{_lambda_.1} parent=1 // pred_fallthru
      _
    // Predicated region
    $region54: #{_lambda_.1} parent=1 // pred_check
      _
    $region55: #{_lambda_.1} parent=1 // pred_check_branch
      %111 = sbr.rel (0) target = $region57
    $region56: #{_lambda_.1} parent=1 // pred_region
      %112 = dma.done [#allocation8], 16
    $region57: #{_lambda_.1} parent=1 // pred_fallthru
      _
    // Predicated region
    $region58: #{_lambda_.1} parent=1 // pred_check
      _
    $region59: #{_lambda_.1} parent=1 // pred_check_branch
      %114 = sbr.rel (0) target = $region61
    $region60: #{_lambda_.1} parent=1 // pred_region
      %115 = dma.done [#allocation11], 512
    $region61: #{_lambda_.1} parent=1 // pred_fallthru
      _
    // Predicated region
    $region62: #{_lambda_.1} parent=1 // pred_check
      _
    $region63: #{_lambda_.1} parent=1 // pred_check_branch
      %117 = sbr.rel (0) target = $region65
    $region64: #{_lambda_.1} parent=1 // pred_region
      %118 = dma.done [#allocation11], 64
    $region65: #{_lambda_.1} parent=1 // pred_fallthru
      _
    // Predicated region
    $region66: #{_lambda_.1} parent=1 // pred_check
      _
    $region67: #{_lambda_.1} parent=1 // pred_check_branch
      %120 = sbr.rel (0) target = $region69
    $region68: #{_lambda_.1} parent=1 // pred_region
      %121 = dma.done [#allocation14], 64
    $region69: #{_lambda_.1} parent=1 // pred_fallthru
      _
    %v122 = vld [vmem:[%s0] sm:$0xff]
    %v123 = vld [vmem:[%s0 + $0x8] sm:$0xff]
    %v124 = vld [vmem:[#allocation4] sm:$0xff]
    %v125 = vld [vmem:[#allocation9] sm:$0x1]
    %v127 = vlaneseq
    %v128 = vshrl.u32 %v127, 7
    %v129 = vsub.s32 0, %v128
    %v130 = vrot.slane %v125, %v129
    %vm132 = vcmask 64512
    %v134 = vsel %vm132, %v122, 0
    %v137 = vsel %vm132, %v123, 0
    %139 = vmatprep.subr.mxu0 0.0
    %140 = vmatpush1.msra.mxu0 %v124
    %141 = vmatprep.subr.mxu0 0.0
    %142 = vmatpush1.msra.mxu0 0.0
    %143 = vmatprep.subr.mxu0 0.0
    %144 = vmatpush1.msra.mxu0 0.0
    %145 = vmatprep.subr.mxu0 0.0
    %146 = vmatpush1.msra.mxu0 0.0
    %147 = vmatprep.subr.mxu0 0.0
    %148 = vmatpush1.msra.mxu0 0.0
    %149 = vmatprep.subr.mxu0 0.0
    %150 = vmatpush1.msra.mxu0 0.0
    %151 = vmatprep.subr.mxu0 0.0
    %152 = vmatpush1.msra.mxu0 0.0
    %153 = vmatprep.subr.mxu0 0.0
    %154 = vmatpush1.msra.mxu0 0.0
    %155 = vmatprep.subr.mxu0 0.0
    %156 = vmatpush1.msra.mxu0 0.0
    %157 = vmatprep.subr.mxu0 0.0
    %158 = vmatpush1.msra.mxu0 0.0
    %159 = vmatprep.subr.mxu0 0.0
    %160 = vmatpush1.msra.mxu0 0.0
    %161 = vmatprep.subr.mxu0 0.0
    %162 = vmatpush1.msra.mxu0 0.0
    %163 = vmatprep.subr.mxu0 0.0
    %164 = vmatpush1.msra.mxu0 0.0
    %165 = vmatprep.subr.mxu0 0.0
    %166 = vmatpush1.msra.mxu0 0.0
    %167 = vmatprep.subr.mxu0 0.0
    %168 = vmatpush1.msra.mxu0 0.0
    %169 = vmatprep.subr.mxu0 0.0
    %170 = vmatpush1.msra.mxu0 0.0
    %171 = vmatprep.subr.mxu0 0.0
    %172 = vmatpush1.msra.mxu0 0.0
    %173 = vmatprep.subr.mxu0 0.0
    %174 = vmatpush1.msra.mxu0 0.0
    %175 = vmatprep.subr.mxu0 0.0
    %176 = vmatpush1.msra.mxu0 0.0
    %177 = vmatprep.subr.mxu0 0.0
    %178 = vmatpush1.msra.mxu0 0.0
    %179 = vmatprep.subr.mxu0 0.0
    %180 = vmatpush1.msra.mxu0 0.0
    %181 = vmatprep.subr.mxu0 0.0
    %182 = vmatpush1.msra.mxu0 0.0
    %183 = vmatprep.subr.mxu0 0.0
    %184 = vmatpush1.msra.mxu0 0.0
    %185 = vmatprep.subr.mxu0 0.0
    %186 = vmatpush1.msra.mxu0 0.0
    %187 = vmatprep.subr.mxu0 0.0
    %188 = vmatpush1.msra.mxu0 0.0
    %189 = vmatprep.subr.mxu0 0.0
    %190 = vmatpush1.msra.mxu0 0.0
    %191 = vmatprep.subr.mxu0 0.0
    %192 = vmatpush1.msra.mxu0 0.0
    %193 = vmatprep.subr.mxu0 0.0
    %194 = vmatpush1.msra.mxu0 0.0
    %195 = vmatprep.subr.mxu0 0.0
    %196 = vmatpush1.msra.mxu0 0.0
    %197 = vmatprep.subr.mxu0 0.0
    %198 = vmatpush1.msra.mxu0 0.0
    %199 = vmatprep.subr.mxu0 0.0
    %200 = vmatpush1.msra.mxu0 0.0
    %201 = vmatprep.subr.mxu0 0.0
    %202 = vmatpush1.msra.mxu0 0.0
    %203 = vmatprep.mubr.f32.mxu0 0.0
    %204 = vmatmul.mubr.f32.gmra.mrb[0].mxu0 %v134
    %v205 = vpop.f32.mrb[0].mxu0
    %v206 = vadd.f32 %v130, %v205
    %v207 = vpop.f32.mrb[0].mxu0
    %208 = vmatprep.mubr.f32.mxu0 0.0
    %209 = vmatmul.mubr.f32.gmra.mrb[0].mxu0 %v137
    %v210 = vpop.f32.mrb[0].mxu0
    %v211 = vadd.f32 %v130, %v210
    %v212 = vpop.f32.mrb[0].mxu0
    %213 = vdwg.mxu0
    %214 = vst [vmem:[#allocation2] sm:$0xff] %v206
    %215 = vst [vmem:[#allocation2 + $0x8] sm:$0xff] %v211
    %v216 = vld [vmem:[#allocation7] sm:$0xff]
    %v217 = vld [vmem:[#allocation7 + $0x8] sm:$0xff]
    %v218 = vld [vmem:[#allocation7 + $0x10] sm:$0xff]
    %v219 = vld [vmem:[#allocation7 + $0x18] sm:$0xff]
    %v220 = vld [vmem:[#allocation12] sm:$0x3]
    %v221 = vld [vmem:[#allocation13] sm:$0x3]
    %v222 = vld [vmem:[#allocation2] sm:$0x3]
    %vm223 = vcmask 261120
    %v225 = vsel %vm223, %v220, 0
    %227 = vmatprep.subr.mxu0 0.0
    %228 = vmatpush1.msra.mxu0 %v216
    %229 = vmatprep.subr.mxu0 0.0
    %230 = vmatpush1.msra.mxu0 %v217
    %231 = vmatprep.subr.mxu0 0.0
    %232 = vmatpush1.msra.mxu0 %v218
    %233 = vmatprep.subr.mxu0 0.0
    %234 = vmatpush1.msra.mxu0 %v219
    %235 = vmatprep.subr.mxu0 0.0
    %236 = vmatpush1.msra.mxu0 0.0
    %237 = vmatprep.subr.mxu0 0.0
    %238 = vmatpush1.msra.mxu0 0.0
    %239 = vmatprep.subr.mxu0 0.0
    %240 = vmatpush1.msra.mxu0 0.0
    %241 = vmatprep.subr.mxu0 0.0
    %242 = vmatpush1.msra.mxu0 0.0
    %243 = vmatprep.subr.mxu0 0.0
    %244 = vmatpush1.msra.mxu0 0.0
    %245 = vmatprep.subr.mxu0 0.0
    %246 = vmatpush1.msra.mxu0 0.0
    %247 = vmatprep.subr.mxu0 0.0
    %248 = vmatpush1.msra.mxu0 0.0
    %249 = vmatprep.subr.mxu0 0.0
    %250 = vmatpush1.msra.mxu0 0.0
    %251 = vmatprep.subr.mxu0 0.0
    %252 = vmatpush1.msra.mxu0 0.0
    %253 = vmatprep.subr.mxu0 0.0
    %254 = vmatpush1.msra.mxu0 0.0
    %255 = vmatprep.subr.mxu0 0.0
    %256 = vmatpush1.msra.mxu0 0.0
    %257 = vmatprep.subr.mxu0 0.0
    %258 = vmatpush1.msra.mxu0 0.0
    %259 = vmatprep.subr.mxu0 0.0
    %260 = vmatpush1.msra.mxu0 0.0
    %261 = vmatprep.subr.mxu0 0.0
    %262 = vmatpush1.msra.mxu0 0.0
    %263 = vmatprep.subr.mxu0 0.0
    %264 = vmatpush1.msra.mxu0 0.0
    %265 = vmatprep.subr.mxu0 0.0
    %266 = vmatpush1.msra.mxu0 0.0
    %267 = vmatprep.subr.mxu0 0.0
    %268 = vmatpush1.msra.mxu0 0.0
    %269 = vmatprep.subr.mxu0 0.0
    %270 = vmatpush1.msra.mxu0 0.0
    %271 = vmatprep.subr.mxu0 0.0
    %272 = vmatpush1.msra.mxu0 0.0
    %273 = vmatprep.subr.mxu0 0.0
    %274 = vmatpush1.msra.mxu0 0.0
    %275 = vmatprep.subr.mxu0 0.0
    %276 = vmatpush1.msra.mxu0 0.0
    %277 = vmatprep.subr.mxu0 0.0
    %278 = vmatpush1.msra.mxu0 0.0
    %279 = vmatprep.subr.mxu0 0.0
    %280 = vmatpush1.msra.mxu0 0.0
    %281 = vmatprep.subr.mxu0 0.0
    %282 = vmatpush1.msra.mxu0 0.0
    %283 = vmatprep.subr.mxu0 0.0
    %284 = vmatpush1.msra.mxu0 0.0
    %285 = vmatprep.subr.mxu0 0.0
    %286 = vmatpush1.msra.mxu0 0.0
    %287 = vmatprep.subr.mxu0 0.0
    %288 = vmatpush1.msra.mxu0 0.0
    %289 = vmatprep.subr.mxu0 0.0
    %290 = vmatpush1.msra.mxu0 0.0
    %291 = vmatprep.mubr.f32.mxu0 0.0
    %292 = vmatmul.mubr.f32.gmra.mrb[0].mxu0 %v225
    %v293 = vpop.f32.mrb[0].mxu0
    %v294 = vadd.f32 0.0, %v293
    %v295 = vpop.f32.mrb[0].mxu0
    %296 = vdwg.mxu0
    %v297 = vadd.f32 %v222, %v294
    %v298 = vxor.u32 %v297, 2147483648
    %v299 = vmul.f32 %v298, 1.442695
    %v300 = vpow.pop %v299
    %v301 = vadd.f32 %v300, 1.0
    %v302 = vrcp.pop %v301
    %v303 = vmul.f32 1.0, %v302
    %v304 = vtanh.pop %v297
    %306 = vrot.lane.b32.xlu0 %v221, 32
    %v307 = vpop.permute.xlu0 %306
    %v309 = vmul.f32 %v303, %v307
    %311 = vrot.lane.b32.xlu0 %v304, 32
    %v312 = vpop.permute.xlu0 %311
    %v314 = vmul.f32 %v303, %v312
    %316 = vrot.lane.b32.xlu0 %v314, 32
    %v317 = vpop.permute.xlu0 %316
    %v319 = vadd.f32 %v309, %v317
    %v320 = vtanh.pop %v319
    %322 = vrot.lane.b32.xlu0 %v320, 32
    %v323 = vpop.permute.xlu0 %322
    %v325 = vmul.f32 %v303, %v323
    %327 = vrot.lane.b32.xlu0 %v325, 64
    %v328 = vpop.permute.xlu0 %327
    %vm330 = vcmask 254976
    %331 = vst.msk [vmem:[#allocation3] sm:$0x3] %vm330, %v328
    %v332 = vld [vmem:[#allocation2 + $0x2] sm:$0x3]
    %v333 = vsel %vm223, %v328, 0
    %335 = vmatprep.subr.mxu0 0.0
    %336 = vmatpush1.msra.mxu0 %v216
    %337 = vmatprep.subr.mxu0 0.0
    %338 = vmatpush1.msra.mxu0 %v217
    %339 = vmatprep.subr.mxu0 0.0
    %340 = vmatpush1.msra.mxu0 %v218
    %341 = vmatprep.subr.mxu0 0.0
    %342 = vmatpush1.msra.mxu0 %v219
    %343 = vmatprep.subr.mxu0 0.0
    %344 = vmatpush1.msra.mxu0 0.0
    %345 = vmatprep.subr.mxu0 0.0
    %346 = vmatpush1.msra.mxu0 0.0
    %347 = vmatprep.subr.mxu0 0.0
    %348 = vmatpush1.msra.mxu0 0.0
    %349 = vmatprep.subr.mxu0 0.0
    %350 = vmatpush1.msra.mxu0 0.0
    %351 = vmatprep.subr.mxu0 0.0
    %352 = vmatpush1.msra.mxu0 0.0
    %353 = vmatprep.subr.mxu0 0.0
    %354 = vmatpush1.msra.mxu0 0.0
    %355 = vmatprep.subr.mxu0 0.0
    %356 = vmatpush1.msra.mxu0 0.0
    %357 = vmatprep.subr.mxu0 0.0
    %358 = vmatpush1.msra.mxu0 0.0
    %359 = vmatprep.subr.mxu0 0.0
    %360 = vmatpush1.msra.mxu0 0.0
    %361 = vmatprep.subr.mxu0 0.0
    %362 = vmatpush1.msra.mxu0 0.0
    %363 = vmatprep.subr.mxu0 0.0
    %364 = vmatpush1.msra.mxu0 0.0
    %365 = vmatprep.subr.mxu0 0.0
    %366 = vmatpush1.msra.mxu0 0.0
    %367 = vmatprep.subr.mxu0 0.0
    %368 = vmatpush1.msra.mxu0 0.0
    %369 = vmatprep.subr.mxu0 0.0
    %370 = vmatpush1.msra.mxu0 0.0
    %371 = vmatprep.subr.mxu0 0.0
    %372 = vmatpush1.msra.mxu0 0.0
    %373 = vmatprep.subr.mxu0 0.0
    %374 = vmatpush1.msra.mxu0 0.0
    %375 = vmatprep.subr.mxu0 0.0
    %376 = vmatpush1.msra.mxu0 0.0
    %377 = vmatprep.subr.mxu0 0.0
    %378 = vmatpush1.msra.mxu0 0.0
    %379 = vmatprep.subr.mxu0 0.0
    %380 = vmatpush1.msra.mxu0 0.0
    %381 = vmatprep.subr.mxu0 0.0
    %382 = vmatpush1.msra.mxu0 0.0
    %383 = vmatprep.subr.mxu0 0.0
    %384 = vmatpush1.msra.mxu0 0.0
    %385 = vmatprep.subr.mxu0 0.0
    %386 = vmatpush1.msra.mxu0 0.0
    %387 = vmatprep.subr.mxu0 0.0
    %388 = vmatpush1.msra.mxu0 0.0
    %389 = vmatprep.subr.mxu0 0.0
    %390 = vmatpush1.msra.mxu0 0.0
    %391 = vmatprep.subr.mxu0 0.0
    %392 = vmatpush1.msra.mxu0 0.0
    %393 = vmatprep.subr.mxu0 0.0
    %394 = vmatpush1.msra.mxu0 0.0
    %395 = vmatprep.subr.mxu0 0.0
    %396 = vmatpush1.msra.mxu0 0.0
    %397 = vmatprep.subr.mxu0 0.0
    %398 = vmatpush1.msra.mxu0 0.0
    %399 = vmatprep.mubr.f32.mxu0 0.0
    %400 = vmatmul.mubr.f32.gmra.mrb[0].mxu0 %v333
    %v401 = vpop.f32.mrb[0].mxu0
    %v402 = vadd.f32 0.0, %v401
    %v403 = vpop.f32.mrb[0].mxu0
    %404 = vdwg.mxu0
    %v405 = vadd.f32 %v332, %v402
    %v406 = vxor.u32 %v405, 2147483648
    %v407 = vmul.f32 %v406, 1.442695
    %v408 = vpow.pop %v407
    %v409 = vadd.f32 %v408, 1.0
    %v410 = vrcp.pop %v409
    %v411 = vmul.f32 1.0, %v410
    %v412 = vtanh.pop %v405
    %v413 = vmul.f32 %v411, %v319
    %415 = vrot.lane.b32.xlu0 %v412, 32
    %v416 = vpop.permute.xlu0 %415
    %v418 = vmul.f32 %v411, %v416
    %420 = vrot.lane.b32.xlu0 %v418, 32
    %v421 = vpop.permute.xlu0 %420
    %v423 = vadd.f32 %v413, %v421
    %v424 = vtanh.pop %v423
    %426 = vrot.lane.b32.xlu0 %v424, 32
    %v427 = vpop.permute.xlu0 %426
    %v429 = vmul.f32 %v411, %v427
    %431 = vrot.lane.b32.xlu0 %v429, 64
    %v432 = vpop.permute.xlu0 %431
    %434 = vst.msk [vmem:[#allocation3 + $0x2] sm:$0x3] %vm330, %v432
    %v435 = vld [vmem:[#allocation2 + $0x4] sm:$0x3]
    %v436 = vsel %vm223, %v432, 0
    %438 = vmatprep.subr.mxu0 0.0
    %439 = vmatpush1.msra.mxu0 %v216
    %440 = vmatprep.subr.mxu0 0.0
    %441 = vmatpush1.msra.mxu0 %v217
    %442 = vmatprep.subr.mxu0 0.0
    %443 = vmatpush1.msra.mxu0 %v218
    %444 = vmatprep.subr.mxu0 0.0
    %445 = vmatpush1.msra.mxu0 %v219
    %446 = vmatprep.subr.mxu0 0.0
    %447 = vmatpush1.msra.mxu0 0.0
    %448 = vmatprep.subr.mxu0 0.0
    %449 = vmatpush1.msra.mxu0 0.0
    %450 = vmatprep.subr.mxu0 0.0
    %451 = vmatpush1.msra.mxu0 0.0
    %452 = vmatprep.subr.mxu0 0.0
    %453 = vmatpush1.msra.mxu0 0.0
    %454 = vmatprep.subr.mxu0 0.0
    %455 = vmatpush1.msra.mxu0 0.0
    %456 = vmatprep.subr.mxu0 0.0
    %457 = vmatpush1.msra.mxu0 0.0
    %458 = vmatprep.subr.mxu0 0.0
    %459 = vmatpush1.msra.mxu0 0.0
    %460 = vmatprep.subr.mxu0 0.0
    %461 = vmatpush1.msra.mxu0 0.0
    %462 = vmatprep.subr.mxu0 0.0
    %463 = vmatpush1.msra.mxu0 0.0
    %464 = vmatprep.subr.mxu0 0.0
    %465 = vmatpush1.msra.mxu0 0.0
    %466 = vmatprep.subr.mxu0 0.0
    %467 = vmatpush1.msra.mxu0 0.0
    %468 = vmatprep.subr.mxu0 0.0
    %469 = vmatpush1.msra.mxu0 0.0
    %470 = vmatprep.subr.mxu0 0.0
    %471 = vmatpush1.msra.mxu0 0.0
    %472 = vmatprep.subr.mxu0 0.0
    %473 = vmatpush1.msra.mxu0 0.0
    %474 = vmatprep.subr.mxu0 0.0
    %475 = vmatpush1.msra.mxu0 0.0
    %476 = vmatprep.subr.mxu0 0.0
    %477 = vmatpush1.msra.mxu0 0.0
    %478 = vmatprep.subr.mxu0 0.0
    %479 = vmatpush1.msra.mxu0 0.0
    %480 = vmatprep.subr.mxu0 0.0
    %481 = vmatpush1.msra.mxu0 0.0
    %482 = vmatprep.subr.mxu0 0.0
    %483 = vmatpush1.msra.mxu0 0.0
    %484 = vmatprep.subr.mxu0 0.0
    %485 = vmatpush1.msra.mxu0 0.0
    %486 = vmatprep.subr.mxu0 0.0
    %487 = vmatpush1.msra.mxu0 0.0
    %488 = vmatprep.subr.mxu0 0.0
    %489 = vmatpush1.msra.mxu0 0.0
    %490 = vmatprep.subr.mxu0 0.0
    %491 = vmatpush1.msra.mxu0 0.0
    %492 = vmatprep.subr.mxu0 0.0
    %493 = vmatpush1.msra.mxu0 0.0
    %494 = vmatprep.subr.mxu0 0.0
    %495 = vmatpush1.msra.mxu0 0.0
    %496 = vmatprep.subr.mxu0 0.0
    %497 = vmatpush1.msra.mxu0 0.0
    %498 = vmatprep.subr.mxu0 0.0
    %499 = vmatpush1.msra.mxu0 0.0
    %500 = vmatprep.subr.mxu0 0.0
    %501 = vmatpush1.msra.mxu0 0.0
    %502 = vmatprep.mubr.f32.mxu0 0.0
    %503 = vmatmul.mubr.f32.gmra.mrb[0].mxu0 %v436
    %v504 = vpop.f32.mrb[0].mxu0
    %v505 = vadd.f32 0.0, %v504
    %v506 = vpop.f32.mrb[0].mxu0
    %507 = vdwg.mxu0
    %v508 = vadd.f32 %v435, %v505
    %v509 = vxor.u32 %v508, 2147483648
    %v510 = vmul.f32 %v509, 1.442695
    %v511 = vpow.pop %v510
    %v512 = vadd.f32 %v511, 1.0
    %v513 = vrcp.pop %v512
    %v514 = vmul.f32 1.0, %v513
    %v515 = vtanh.pop %v508
    %v516 = vmul.f32 %v514, %v423
    %518 = vrot.lane.b32.xlu0 %v515, 32
    %v519 = vpop.permute.xlu0 %518
    %v521 = vmul.f32 %v514, %v519
    %523 = vrot.lane.b32.xlu0 %v521, 32
    %v524 = vpop.permute.xlu0 %523
    %v526 = vadd.f32 %v516, %v524
    %v527 = vtanh.pop %v526
    %529 = vrot.lane.b32.xlu0 %v527, 32
    %v530 = vpop.permute.xlu0 %529
    %v532 = vmul.f32 %v514, %v530
    %534 = vrot.lane.b32.xlu0 %v532, 64
    %v535 = vpop.permute.xlu0 %534
    %537 = vst.msk [vmem:[#allocation3 + $0x4] sm:$0x3] %vm330, %v535
    %v538 = vld [vmem:[#allocation2 + $0x6] sm:$0x3]
    %v539 = vsel %vm223, %v535, 0
    %541 = vmatprep.subr.mxu0 0.0
    %542 = vmatpush1.msra.mxu0 %v216
    %543 = vmatprep.subr.mxu0 0.0
    %544 = vmatpush1.msra.mxu0 %v217
    %545 = vmatprep.subr.mxu0 0.0
    %546 = vmatpush1.msra.mxu0 %v218
    %547 = vmatprep.subr.mxu0 0.0
    %548 = vmatpush1.msra.mxu0 %v219
    %549 = vmatprep.subr.mxu0 0.0
    %550 = vmatpush1.msra.mxu0 0.0
    %551 = vmatprep.subr.mxu0 0.0
    %552 = vmatpush1.msra.mxu0 0.0
    %553 = vmatprep.subr.mxu0 0.0
    %554 = vmatpush1.msra.mxu0 0.0
    %555 = vmatprep.subr.mxu0 0.0
    %556 = vmatpush1.msra.mxu0 0.0
    %557 = vmatprep.subr.mxu0 0.0
    %558 = vmatpush1.msra.mxu0 0.0
    %559 = vmatprep.subr.mxu0 0.0
    %560 = vmatpush1.msra.mxu0 0.0
    %561 = vmatprep.subr.mxu0 0.0
    %562 = vmatpush1.msra.mxu0 0.0
    %563 = vmatprep.subr.mxu0 0.0
    %564 = vmatpush1.msra.mxu0 0.0
    %565 = vmatprep.subr.mxu0 0.0
    %566 = vmatpush1.msra.mxu0 0.0
    %567 = vmatprep.subr.mxu0 0.0
    %568 = vmatpush1.msra.mxu0 0.0
    %569 = vmatprep.subr.mxu0 0.0
    %570 = vmatpush1.msra.mxu0 0.0
    %571 = vmatprep.subr.mxu0 0.0
    %572 = vmatpush1.msra.mxu0 0.0
    %573 = vmatprep.subr.mxu0 0.0
    %574 = vmatpush1.msra.mxu0 0.0
    %575 = vmatprep.subr.mxu0 0.0
    %576 = vmatpush1.msra.mxu0 0.0
    %577 = vmatprep.subr.mxu0 0.0
    %578 = vmatpush1.msra.mxu0 0.0
    %579 = vmatprep.subr.mxu0 0.0
    %580 = vmatpush1.msra.mxu0 0.0
    %581 = vmatprep.subr.mxu0 0.0
    %582 = vmatpush1.msra.mxu0 0.0
    %583 = vmatprep.subr.mxu0 0.0
    %584 = vmatpush1.msra.mxu0 0.0
    %585 = vmatprep.subr.mxu0 0.0
    %586 = vmatpush1.msra.mxu0 0.0
    %587 = vmatprep.subr.mxu0 0.0
    %588 = vmatpush1.msra.mxu0 0.0
    %589 = vmatprep.subr.mxu0 0.0
    %590 = vmatpush1.msra.mxu0 0.0
    %591 = vmatprep.subr.mxu0 0.0
    %592 = vmatpush1.msra.mxu0 0.0
    %593 = vmatprep.subr.mxu0 0.0
    %594 = vmatpush1.msra.mxu0 0.0
    %595 = vmatprep.subr.mxu0 0.0
    %596 = vmatpush1.msra.mxu0 0.0
    %597 = vmatprep.subr.mxu0 0.0
    %598 = vmatpush1.msra.mxu0 0.0
    %599 = vmatprep.subr.mxu0 0.0
    %600 = vmatpush1.msra.mxu0 0.0
    %601 = vmatprep.subr.mxu0 0.0
    %602 = vmatpush1.msra.mxu0 0.0
    %603 = vmatprep.subr.mxu0 0.0
    %604 = vmatpush1.msra.mxu0 0.0
    %605 = vmatprep.mubr.f32.mxu0 0.0
    %606 = vmatmul.mubr.f32.gmra.mrb[0].mxu0 %v539
    %v607 = vpop.f32.mrb[0].mxu0
    %v608 = vadd.f32 0.0, %v607
    %v609 = vpop.f32.mrb[0].mxu0
    %610 = vdwg.mxu0
    %v611 = vadd.f32 %v538, %v608
    %v612 = vxor.u32 %v611, 2147483648
    %v613 = vmul.f32 %v612, 1.442695
    %v614 = vpow.pop %v613
    %v615 = vadd.f32 %v614, 1.0
    %v616 = vrcp.pop %v615
    %v617 = vmul.f32 1.0, %v616
    %v618 = vtanh.pop %v611
    %v619 = vmul.f32 %v617, %v526
    %621 = vrot.lane.b32.xlu0 %v618, 32
    %v622 = vpop.permute.xlu0 %621
    %v624 = vmul.f32 %v617, %v622
    %626 = vrot.lane.b32.xlu0 %v624, 32
    %v627 = vpop.permute.xlu0 %626
    %v629 = vadd.f32 %v619, %v627
    %v630 = vtanh.pop %v629
    %632 = vrot.lane.b32.xlu0 %v630, 32
    %v633 = vpop.permute.xlu0 %632
    %v635 = vmul.f32 %v617, %v633
    %637 = vrot.lane.b32.xlu0 %v635, 64
    %v638 = vpop.permute.xlu0 %637
    %640 = vst.msk [vmem:[#allocation3 + $0x6] sm:$0x3] %vm330, %v638
    %v641 = vld [vmem:[#allocation2 + $0x8] sm:$0x3]
    %v642 = vsel %vm223, %v638, 0
    %644 = vmatprep.subr.mxu0 0.0
    %645 = vmatpush1.msra.mxu0 %v216
    %646 = vmatprep.subr.mxu0 0.0
    %647 = vmatpush1.msra.mxu0 %v217
    %648 = vmatprep.subr.mxu0 0.0
    %649 = vmatpush1.msra.mxu0 %v218
    %650 = vmatprep.subr.mxu0 0.0
    %651 = vmatpush1.msra.mxu0 %v219
    %652 = vmatprep.subr.mxu0 0.0
    %653 = vmatpush1.msra.mxu0 0.0
    %654 = vmatprep.subr.mxu0 0.0
    %655 = vmatpush1.msra.mxu0 0.0
    %656 = vmatprep.subr.mxu0 0.0
    %657 = vmatpush1.msra.mxu0 0.0
    %658 = vmatprep.subr.mxu0 0.0
    %659 = vmatpush1.msra.mxu0 0.0
    %660 = vmatprep.subr.mxu0 0.0
    %661 = vmatpush1.msra.mxu0 0.0
    %662 = vmatprep.subr.mxu0 0.0
    %663 = vmatpush1.msra.mxu0 0.0
    %664 = vmatprep.subr.mxu0 0.0
    %665 = vmatpush1.msra.mxu0 0.0
    %666 = vmatprep.subr.mxu0 0.0
    %667 = vmatpush1.msra.mxu0 0.0
    %668 = vmatprep.subr.mxu0 0.0
    %669 = vmatpush1.msra.mxu0 0.0
    %670 = vmatprep.subr.mxu0 0.0
    %671 = vmatpush1.msra.mxu0 0.0
    %672 = vmatprep.subr.mxu0 0.0
    %673 = vmatpush1.msra.mxu0 0.0
    %674 = vmatprep.subr.mxu0 0.0
    %675 = vmatpush1.msra.mxu0 0.0
    %676 = vmatprep.subr.mxu0 0.0
    %677 = vmatpush1.msra.mxu0 0.0
    %678 = vmatprep.subr.mxu0 0.0
    %679 = vmatpush1.msra.mxu0 0.0
    %680 = vmatprep.subr.mxu0 0.0
    %681 = vmatpush1.msra.mxu0 0.0
    %682 = vmatprep.subr.mxu0 0.0
    %683 = vmatpush1.msra.mxu0 0.0
    %684 = vmatprep.subr.mxu0 0.0
    %685 = vmatpush1.msra.mxu0 0.0
    %686 = vmatprep.subr.mxu0 0.0
    %687 = vmatpush1.msra.mxu0 0.0
    %688 = vmatprep.subr.mxu0 0.0
    %689 = vmatpush1.msra.mxu0 0.0
    %690 = vmatprep.subr.mxu0 0.0
    %691 = vmatpush1.msra.mxu0 0.0
    %692 = vmatprep.subr.mxu0 0.0
    %693 = vmatpush1.msra.mxu0 0.0
    %694 = vmatprep.subr.mxu0 0.0
    %695 = vmatpush1.msra.mxu0 0.0
    %696 = vmatprep.subr.mxu0 0.0
    %697 = vmatpush1.msra.mxu0 0.0
    %698 = vmatprep.subr.mxu0 0.0
    %699 = vmatpush1.msra.mxu0 0.0
    %700 = vmatprep.subr.mxu0 0.0
    %701 = vmatpush1.msra.mxu0 0.0
    %702 = vmatprep.subr.mxu0 0.0
    %703 = vmatpush1.msra.mxu0 0.0
    %704 = vmatprep.subr.mxu0 0.0
    %705 = vmatpush1.msra.mxu0 0.0
    %706 = vmatprep.subr.mxu0 0.0
    %707 = vmatpush1.msra.mxu0 0.0
    %708 = vmatprep.mubr.f32.mxu0 0.0
    %709 = vmatmul.mubr.f32.gmra.mrb[0].mxu0 %v642
    %v710 = vpop.f32.mrb[0].mxu0
    %v711 = vadd.f32 0.0, %v710
    %v712 = vpop.f32.mrb[0].mxu0
    %713 = vdwg.mxu0
    %v714 = vadd.f32 %v641, %v711
    %v715 = vxor.u32 %v714, 2147483648
    %v716 = vmul.f32 %v715, 1.442695
    %v717 = vpow.pop %v716
    %v718 = vadd.f32 %v717, 1.0
    %v719 = vrcp.pop %v718
    %v720 = vmul.f32 1.0, %v719
    %v721 = vtanh.pop %v714
    %v722 = vmul.f32 %v720, %v629
    %724 = vrot.lane.b32.xlu0 %v721, 32
    %v725 = vpop.permute.xlu0 %724
    %v727 = vmul.f32 %v720, %v725
    %729 = vrot.lane.b32.xlu0 %v727, 32
    %v730 = vpop.permute.xlu0 %729
    %v732 = vadd.f32 %v722, %v730
    %v733 = vtanh.pop %v732
    %735 = vrot.lane.b32.xlu0 %v733, 32
    %v736 = vpop.permute.xlu0 %735
    %v738 = vmul.f32 %v720, %v736
    %740 = vrot.lane.b32.xlu0 %v738, 64
    %v741 = vpop.permute.xlu0 %740
    %743 = vst.msk [vmem:[#allocation3 + $0x8] sm:$0x3] %vm330, %v741
    %v744 = vld [vmem:[#allocation2 + $0xa] sm:$0x3]
    %v745 = vsel %vm223, %v741, 0
    %747 = vmatprep.subr.mxu0 0.0
    %748 = vmatpush1.msra.mxu0 %v216
    %749 = vmatprep.subr.mxu0 0.0
    %750 = vmatpush1.msra.mxu0 %v217
    %751 = vmatprep.subr.mxu0 0.0
    %752 = vmatpush1.msra.mxu0 %v218
    %753 = vmatprep.subr.mxu0 0.0
    %754 = vmatpush1.msra.mxu0 %v219
    %755 = vmatprep.subr.mxu0 0.0
    %756 = vmatpush1.msra.mxu0 0.0
    %757 = vmatprep.subr.mxu0 0.0
    %758 = vmatpush1.msra.mxu0 0.0
    %759 = vmatprep.subr.mxu0 0.0
    %760 = vmatpush1.msra.mxu0 0.0
    %761 = vmatprep.subr.mxu0 0.0
    %762 = vmatpush1.msra.mxu0 0.0
    %763 = vmatprep.subr.mxu0 0.0
    %764 = vmatpush1.msra.mxu0 0.0
    %765 = vmatprep.subr.mxu0 0.0
    %766 = vmatpush1.msra.mxu0 0.0
    %767 = vmatprep.subr.mxu0 0.0
    %768 = vmatpush1.msra.mxu0 0.0
    %769 = vmatprep.subr.mxu0 0.0
    %770 = vmatpush1.msra.mxu0 0.0
    %771 = vmatprep.subr.mxu0 0.0
    %772 = vmatpush1.msra.mxu0 0.0
    %773 = vmatprep.subr.mxu0 0.0
    %774 = vmatpush1.msra.mxu0 0.0
    %775 = vmatprep.subr.mxu0 0.0
    %776 = vmatpush1.msra.mxu0 0.0
    %777 = vmatprep.subr.mxu0 0.0
    %778 = vmatpush1.msra.mxu0 0.0
    %779 = vmatprep.subr.mxu0 0.0
    %780 = vmatpush1.msra.mxu0 0.0
    %781 = vmatprep.subr.mxu0 0.0
    %782 = vmatpush1.msra.mxu0 0.0
    %783 = vmatprep.subr.mxu0 0.0
    %784 = vmatpush1.msra.mxu0 0.0
    %785 = vmatprep.subr.mxu0 0.0
    %786 = vmatpush1.msra.mxu0 0.0
    %787 = vmatprep.subr.mxu0 0.0
    %788 = vmatpush1.msra.mxu0 0.0
    %789 = vmatprep.subr.mxu0 0.0
    %790 = vmatpush1.msra.mxu0 0.0
    %791 = vmatprep.subr.mxu0 0.0
    %792 = vmatpush1.msra.mxu0 0.0
    %793 = vmatprep.subr.mxu0 0.0
    %794 = vmatpush1.msra.mxu0 0.0
    %795 = vmatprep.subr.mxu0 0.0
    %796 = vmatpush1.msra.mxu0 0.0
    %797 = vmatprep.subr.mxu0 0.0
    %798 = vmatpush1.msra.mxu0 0.0
    %799 = vmatprep.subr.mxu0 0.0
    %800 = vmatpush1.msra.mxu0 0.0
    %801 = vmatprep.subr.mxu0 0.0
    %802 = vmatpush1.msra.mxu0 0.0
    %803 = vmatprep.subr.mxu0 0.0
    %804 = vmatpush1.msra.mxu0 0.0
    %805 = vmatprep.subr.mxu0 0.0
    %806 = vmatpush1.msra.mxu0 0.0
    %807 = vmatprep.subr.mxu0 0.0
    %808 = vmatpush1.msra.mxu0 0.0
    %809 = vmatprep.subr.mxu0 0.0
    %810 = vmatpush1.msra.mxu0 0.0
    %811 = vmatprep.mubr.f32.mxu0 0.0
    %812 = vmatmul.mubr.f32.gmra.mrb[0].mxu0 %v745
    %v813 = vpop.f32.mrb[0].mxu0
    %v814 = vadd.f32 0.0, %v813
    %v815 = vpop.f32.mrb[0].mxu0
    %816 = vdwg.mxu0
    %v817 = vadd.f32 %v744, %v814
    %v818 = vxor.u32 %v817, 2147483648
    %v819 = vmul.f32 %v818, 1.442695
    %v820 = vpow.pop %v819
    %v821 = vadd.f32 %v820, 1.0
    %v822 = vrcp.pop %v821
    %v823 = vmul.f32 1.0, %v822
    %v824 = vtanh.pop %v817
    %v825 = vmul.f32 %v823, %v732
    %827 = vrot.lane.b32.xlu0 %v824, 32
    %v828 = vpop.permute.xlu0 %827
    %v830 = vmul.f32 %v823, %v828
    %832 = vrot.lane.b32.xlu0 %v830, 32
    %v833 = vpop.permute.xlu0 %832
    %v835 = vadd.f32 %v825, %v833
    %v836 = vtanh.pop %v835
    %838 = vrot.lane.b32.xlu0 %v836, 32
    %v839 = vpop.permute.xlu0 %838
    %v841 = vmul.f32 %v823, %v839
    %843 = vrot.lane.b32.xlu0 %v841, 64
    %v844 = vpop.permute.xlu0 %843
    %846 = vst.msk [vmem:[#allocation3 + $0xa] sm:$0x3] %vm330, %v844
    %v847 = vld [vmem:[#allocation2 + $0xc] sm:$0x3]
    %v848 = vsel %vm223, %v844, 0
    %850 = vmatprep.subr.mxu0 0.0
    %851 = vmatpush1.msra.mxu0 %v216
    %852 = vmatprep.subr.mxu0 0.0
    %853 = vmatpush1.msra.mxu0 %v217
    %854 = vmatprep.subr.mxu0 0.0
    %855 = vmatpush1.msra.mxu0 %v218
    %856 = vmatprep.subr.mxu0 0.0
    %857 = vmatpush1.msra.mxu0 %v219
    %858 = vmatprep.subr.mxu0 0.0
    %859 = vmatpush1.msra.mxu0 0.0
    %860 = vmatprep.subr.mxu0 0.0
    %861 = vmatpush1.msra.mxu0 0.0
    %862 = vmatprep.subr.mxu0 0.0
    %863 = vmatpush1.msra.mxu0 0.0
    %864 = vmatprep.subr.mxu0 0.0
    %865 = vmatpush1.msra.mxu0 0.0
    %866 = vmatprep.subr.mxu0 0.0
    %867 = vmatpush1.msra.mxu0 0.0
    %868 = vmatprep.subr.mxu0 0.0
    %869 = vmatpush1.msra.mxu0 0.0
    %870 = vmatprep.subr.mxu0 0.0
    %871 = vmatpush1.msra.mxu0 0.0
    %872 = vmatprep.subr.mxu0 0.0
    %873 = vmatpush1.msra.mxu0 0.0
    %874 = vmatprep.subr.mxu0 0.0
    %875 = vmatpush1.msra.mxu0 0.0
    %876 = vmatprep.subr.mxu0 0.0
    %877 = vmatpush1.msra.mxu0 0.0
    %878 = vmatprep.subr.mxu0 0.0
    %879 = vmatpush1.msra.mxu0 0.0
    %880 = vmatprep.subr.mxu0 0.0
    %881 = vmatpush1.msra.mxu0 0.0
    %882 = vmatprep.subr.mxu0 0.0
    %883 = vmatpush1.msra.mxu0 0.0
    %884 = vmatprep.subr.mxu0 0.0
    %885 = vmatpush1.msra.mxu0 0.0
    %886 = vmatprep.subr.mxu0 0.0
    %887 = vmatpush1.msra.mxu0 0.0
    %888 = vmatprep.subr.mxu0 0.0
    %889 = vmatpush1.msra.mxu0 0.0
    %890 = vmatprep.subr.mxu0 0.0
    %891 = vmatpush1.msra.mxu0 0.0
    %892 = vmatprep.subr.mxu0 0.0
    %893 = vmatpush1.msra.mxu0 0.0
    %894 = vmatprep.subr.mxu0 0.0
    %895 = vmatpush1.msra.mxu0 0.0
    %896 = vmatprep.subr.mxu0 0.0
    %897 = vmatpush1.msra.mxu0 0.0
    %898 = vmatprep.subr.mxu0 0.0
    %899 = vmatpush1.msra.mxu0 0.0
    %900 = vmatprep.subr.mxu0 0.0
    %901 = vmatpush1.msra.mxu0 0.0
    %902 = vmatprep.subr.mxu0 0.0
    %903 = vmatpush1.msra.mxu0 0.0
    %904 = vmatprep.subr.mxu0 0.0
    %905 = vmatpush1.msra.mxu0 0.0
    %906 = vmatprep.subr.mxu0 0.0
    %907 = vmatpush1.msra.mxu0 0.0
    %908 = vmatprep.subr.mxu0 0.0
    %909 = vmatpush1.msra.mxu0 0.0
    %910 = vmatprep.subr.mxu0 0.0
    %911 = vmatpush1.msra.mxu0 0.0
    %912 = vmatprep.subr.mxu0 0.0
    %913 = vmatpush1.msra.mxu0 0.0
    %914 = vmatprep.mubr.f32.mxu0 0.0
    %915 = vmatmul.mubr.f32.gmra.mrb[0].mxu0 %v848
    %v916 = vpop.f32.mrb[0].mxu0
    %v917 = vadd.f32 0.0, %v916
    %v918 = vpop.f32.mrb[0].mxu0
    %919 = vdwg.mxu0
    %v920 = vadd.f32 %v847, %v917
    %v921 = vxor.u32 %v920, 2147483648
    %v922 = vmul.f32 %v921, 1.442695
    %v923 = vpow.pop %v922
    %v924 = vadd.f32 %v923, 1.0
    %v925 = vrcp.pop %v924
    %v926 = vmul.f32 1.0, %v925
    %v927 = vtanh.pop %v920
    %v928 = vmul.f32 %v926, %v835
    %930 = vrot.lane.b32.xlu0 %v927, 32
    %v931 = vpop.permute.xlu0 %930
    %v933 = vmul.f32 %v926, %v931
    %935 = vrot.lane.b32.xlu0 %v933, 32
    %v936 = vpop.permute.xlu0 %935
    %v938 = vadd.f32 %v928, %v936
    %v939 = vtanh.pop %v938
    %941 = vrot.lane.b32.xlu0 %v939, 32
    %v942 = vpop.permute.xlu0 %941
    %v944 = vmul.f32 %v926, %v942
    %946 = vrot.lane.b32.xlu0 %v944, 64
    %v947 = vpop.permute.xlu0 %946
    %949 = vst.msk [vmem:[#allocation3 + $0xc] sm:$0x3] %vm330, %v947
    %v950 = vld [vmem:[#allocation2 + $0xe] sm:$0x3]
    %v951 = vsel %vm223, %v947, 0
    %953 = vmatprep.subr.mxu0 0.0
    %954 = vmatpush1.msra.mxu0 %v216
    %955 = vmatprep.subr.mxu0 0.0
    %956 = vmatpush1.msra.mxu0 %v217
    %957 = vmatprep.subr.mxu0 0.0
    %958 = vmatpush1.msra.mxu0 %v218
    %959 = vmatprep.subr.mxu0 0.0
    %960 = vmatpush1.msra.mxu0 %v219
    %961 = vmatprep.subr.mxu0 0.0
    %962 = vmatpush1.msra.mxu0 0.0
    %963 = vmatprep.subr.mxu0 0.0
    %964 = vmatpush1.msra.mxu0 0.0
    %965 = vmatprep.subr.mxu0 0.0
    %966 = vmatpush1.msra.mxu0 0.0
    %967 = vmatprep.subr.mxu0 0.0
    %968 = vmatpush1.msra.mxu0 0.0
    %969 = vmatprep.subr.mxu0 0.0
    %970 = vmatpush1.msra.mxu0 0.0
    %971 = vmatprep.subr.mxu0 0.0
    %972 = vmatpush1.msra.mxu0 0.0
    %973 = vmatprep.subr.mxu0 0.0
    %974 = vmatpush1.msra.mxu0 0.0
    %975 = vmatprep.subr.mxu0 0.0
    %976 = vmatpush1.msra.mxu0 0.0
    %977 = vmatprep.subr.mxu0 0.0
    %978 = vmatpush1.msra.mxu0 0.0
    %979 = vmatprep.subr.mxu0 0.0
    %980 = vmatpush1.msra.mxu0 0.0
    %981 = vmatprep.subr.mxu0 0.0
    %982 = vmatpush1.msra.mxu0 0.0
    %983 = vmatprep.subr.mxu0 0.0
    %984 = vmatpush1.msra.mxu0 0.0
    %985 = vmatprep.subr.mxu0 0.0
    %986 = vmatpush1.msra.mxu0 0.0
    %987 = vmatprep.subr.mxu0 0.0
    %988 = vmatpush1.msra.mxu0 0.0
    %989 = vmatprep.subr.mxu0 0.0
    %990 = vmatpush1.msra.mxu0 0.0
    %991 = vmatprep.subr.mxu0 0.0
    %992 = vmatpush1.msra.mxu0 0.0
    %993 = vmatprep.subr.mxu0 0.0
    %994 = vmatpush1.msra.mxu0 0.0
    %995 = vmatprep.subr.mxu0 0.0
    %996 = vmatpush1.msra.mxu0 0.0
    %997 = vmatprep.subr.mxu0 0.0
    %998 = vmatpush1.msra.mxu0 0.0
    %999 = vmatprep.subr.mxu0 0.0
    %1000 = vmatpush1.msra.mxu0 0.0
    %1001 = vmatprep.subr.mxu0 0.0
    %1002 = vmatpush1.msra.mxu0 0.0
    %1003 = vmatprep.subr.mxu0 0.0
    %1004 = vmatpush1.msra.mxu0 0.0
    %1005 = vmatprep.subr.mxu0 0.0
    %1006 = vmatpush1.msra.mxu0 0.0
    %1007 = vmatprep.subr.mxu0 0.0
    %1008 = vmatpush1.msra.mxu0 0.0
    %1009 = vmatprep.subr.mxu0 0.0
    %1010 = vmatpush1.msra.mxu0 0.0
    %1011 = vmatprep.subr.mxu0 0.0
    %1012 = vmatpush1.msra.mxu0 0.0
    %1013 = vmatprep.subr.mxu0 0.0
    %1014 = vmatpush1.msra.mxu0 0.0
    %1015 = vmatprep.subr.mxu0 0.0
    %1016 = vmatpush1.msra.mxu0 0.0
    %1017 = vmatprep.mubr.f32.mxu0 0.0
    %1018 = vmatmul.mubr.f32.gmra.mrb[0].mxu0 %v951
    %v1019 = vpop.f32.mrb[0].mxu0
    %v1020 = vadd.f32 0.0, %v1019
    %v1021 = vpop.f32.mrb[0].mxu0
    %1022 = vdwg.mxu0
    %v1023 = vadd.f32 %v950, %v1020
    %v1024 = vxor.u32 %v1023, 2147483648
    %v1025 = vmul.f32 %v1024, 1.442695
    %v1026 = vpow.pop %v1025
    %v1027 = vadd.f32 %v1026, 1.0
    %v1028 = vrcp.pop %v1027
    %v1029 = vmul.f32 1.0, %v1028
    %v1030 = vtanh.pop %v1023
    %v1031 = vmul.f32 %v1029, %v938
    %1033 = vrot.lane.b32.xlu0 %v1030, 32
    %v1034 = vpop.permute.xlu0 %1033
    %v1036 = vmul.f32 %v1029, %v1034
    %1038 = vrot.lane.b32.xlu0 %v1036, 32
    %v1039 = vpop.permute.xlu0 %1038
    %v1041 = vadd.f32 %v1031, %v1039
    %v1042 = vtanh.pop %v1041
    %1044 = vrot.lane.b32.xlu0 %v1042, 32
    %v1045 = vpop.permute.xlu0 %1044
    %v1047 = vmul.f32 %v1029, %v1045
    %1049 = vrot.lane.b32.xlu0 %v1047, 64
    %v1050 = vpop.permute.xlu0 %1049
    %1052 = vst.msk [vmem:[#allocation3 + $0xe] sm:$0x3] %vm330, %v1050
    %1053 = vst.msk [vmem:[#allocation15] sm:$0x3] %vm330, %v1050
    %1055 = vrot.lane.b32.xlu0 %v1041, 96
    %v1056 = vpop.permute.xlu0 %1055
    %1058 = vst.msk [vmem:[#allocation16] sm:$0x3] %vm330, %v1056
    %v1059 = vld [vmem:[#allocation3] sm:$0xff]
    %v1060 = vld [vmem:[#allocation3 + $0x8] sm:$0xff]
    %v1061 = vld [vmem:[#allocation10] sm:$0xff]
    %v1062 = vld [vmem:[#allocation10 + $0x8] sm:$0xff]
    %v1063 = vld [vmem:[#allocation10 + $0x10] sm:$0xff]
    %v1064 = vld [vmem:[#allocation10 + $0x18] sm:$0xff]
    %v1065 = vld [vmem:[%s6] sm:$0x1]
    %v1067 = vlaneseq
    %v1068 = vshrl.u32 %v1067, 7
    %v1069 = vsub.s32 0, %v1068
    %v1070 = vrot.slane %v1065, %v1069
    %v1073 = vsel %vm223, %v1059, 0
    %v1076 = vsel %vm223, %v1060, 0
    %1078 = vmatprep.subr.mxu0 0.0
    %1079 = vmatpush1.msra.mxu0 %v1061
    %1080 = vmatprep.subr.mxu0 0.0
    %1081 = vmatpush1.msra.mxu0 %v1062
    %1082 = vmatprep.subr.mxu0 0.0
    %1083 = vmatpush1.msra.mxu0 %v1063
    %1084 = vmatprep.subr.mxu0 0.0
    %1085 = vmatpush1.msra.mxu0 %v1064
    %1086 = vmatprep.subr.mxu0 0.0
    %1087 = vmatpush1.msra.mxu0 0.0
    %1088 = vmatprep.subr.mxu0 0.0
    %1089 = vmatpush1.msra.mxu0 0.0
    %1090 = vmatprep.subr.mxu0 0.0
    %1091 = vmatpush1.msra.mxu0 0.0
    %1092 = vmatprep.subr.mxu0 0.0
    %1093 = vmatpush1.msra.mxu0 0.0
    %1094 = vmatprep.subr.mxu0 0.0
    %1095 = vmatpush1.msra.mxu0 0.0
    %1096 = vmatprep.subr.mxu0 0.0
    %1097 = vmatpush1.msra.mxu0 0.0
    %1098 = vmatprep.subr.mxu0 0.0
    %1099 = vmatpush1.msra.mxu0 0.0
    %1100 = vmatprep.subr.mxu0 0.0
    %1101 = vmatpush1.msra.mxu0 0.0
    %1102 = vmatprep.subr.mxu0 0.0
    %1103 = vmatpush1.msra.mxu0 0.0
    %1104 = vmatprep.subr.mxu0 0.0
    %1105 = vmatpush1.msra.mxu0 0.0
    %1106 = vmatprep.subr.mxu0 0.0
    %1107 = vmatpush1.msra.mxu0 0.0
    %1108 = vmatprep.subr.mxu0 0.0
    %1109 = vmatpush1.msra.mxu0 0.0
    %1110 = vmatprep.subr.mxu0 0.0
    %1111 = vmatpush1.msra.mxu0 0.0
    %1112 = vmatprep.subr.mxu0 0.0
    %1113 = vmatpush1.msra.mxu0 0.0
    %1114 = vmatprep.subr.mxu0 0.0
    %1115 = vmatpush1.msra.mxu0 0.0
    %1116 = vmatprep.subr.mxu0 0.0
    %1117 = vmatpush1.msra.mxu0 0.0
    %1118 = vmatprep.subr.mxu0 0.0
    %1119 = vmatpush1.msra.mxu0 0.0
    %1120 = vmatprep.subr.mxu0 0.0
    %1121 = vmatpush1.msra.mxu0 0.0
    %1122 = vmatprep.subr.mxu0 0.0
    %1123 = vmatpush1.msra.mxu0 0.0
    %1124 = vmatprep.subr.mxu0 0.0
    %1125 = vmatpush1.msra.mxu0 0.0
    %1126 = vmatprep.subr.mxu0 0.0
    %1127 = vmatpush1.msra.mxu0 0.0
    %1128 = vmatprep.subr.mxu0 0.0
    %1129 = vmatpush1.msra.mxu0 0.0
    %1130 = vmatprep.subr.mxu0 0.0
    %1131 = vmatpush1.msra.mxu0 0.0
    %1132 = vmatprep.subr.mxu0 0.0
    %1133 = vmatpush1.msra.mxu0 0.0
    %1134 = vmatprep.subr.mxu0 0.0
    %1135 = vmatpush1.msra.mxu0 0.0
    %1136 = vmatprep.subr.mxu0 0.0
    %1137 = vmatpush1.msra.mxu0 0.0
    %1138 = vmatprep.subr.mxu0 0.0
    %1139 = vmatpush1.msra.mxu0 0.0
    %1140 = vmatprep.subr.mxu0 0.0
    %1141 = vmatpush1.msra.mxu0 0.0
    %1142 = vmatprep.mubr.f32.mxu0 0.0
    %1143 = vmatmul.mubr.f32.gmra.mrb[0].mxu0 %v1073
    %v1144 = vpop.f32.mrb[0].mxu0
    %v1145 = vadd.f32 %v1070, %v1144
    %v1146 = vpop.f32.mrb[0].mxu0
    %1147 = vmatprep.mubr.f32.mxu0 0.0
    %1148 = vmatmul.mubr.f32.gmra.mrb[0].mxu0 %v1076
    %v1149 = vpop.f32.mrb[0].mxu0
    %v1150 = vadd.f32 %v1070, %v1149
    %v1151 = vpop.f32.mrb[0].mxu0
    %1152 = vdwg.mxu0
    %1153 = vst [vmem:[#allocation2] sm:$0xff] %v1145
    %1154 = vst [vmem:[#allocation2 + $0x8] sm:$0xff] %v1150
    %v1155 = vld [vmem:[%s5] sm:$0xff]
    %v1156 = vld [vmem:[%s5 + $0x8] sm:$0xff]
    %v1157 = vld [vmem:[%s5 + $0x10] sm:$0xff]
    %v1158 = vld [vmem:[%s5 + $0x18] sm:$0xff]
    %s1159 = scalar_lea.vmem [#allocation12], 2
    %v1160 = vld [vmem:[%s1159] sm:$0x3]
    %s1161 = scalar_lea.vmem [#allocation13], 2
    %v1162 = vld [vmem:[%s1161] sm:$0x3]
    %v1163 = vld [vmem:[#allocation2] sm:$0x3]
    %v1165 = vsel %vm223, %v1160, 0
    %1167 = vmatprep.subr.mxu0 0.0
    %1168 = vmatpush1.msra.mxu0 %v1155
    %1169 = vmatprep.subr.mxu0 0.0
    %1170 = vmatpush1.msra.mxu0 %v1156
    %1171 = vmatprep.subr.mxu0 0.0
    %1172 = vmatpush1.msra.mxu0 %v1157
    %1173 = vmatprep.subr.mxu0 0.0
    %1174 = vmatpush1.msra.mxu0 %v1158
    %1175 = vmatprep.subr.mxu0 0.0
    %1176 = vmatpush1.msra.mxu0 0.0
    %1177 = vmatprep.subr.mxu0 0.0
    %1178 = vmatpush1.msra.mxu0 0.0
    %1179 = vmatprep.subr.mxu0 0.0
    %1180 = vmatpush1.msra.mxu0 0.0
    %1181 = vmatprep.subr.mxu0 0.0
    %1182 = vmatpush1.msra.mxu0 0.0
    %1183 = vmatprep.subr.mxu0 0.0
    %1184 = vmatpush1.msra.mxu0 0.0
    %1185 = vmatprep.subr.mxu0 0.0
    %1186 = vmatpush1.msra.mxu0 0.0
    %1187 = vmatprep.subr.mxu0 0.0
    %1188 = vmatpush1.msra.mxu0 0.0
    %1189 = vmatprep.subr.mxu0 0.0
    %1190 = vmatpush1.msra.mxu0 0.0
    %1191 = vmatprep.subr.mxu0 0.0
    %1192 = vmatpush1.msra.mxu0 0.0
    %1193 = vmatprep.subr.mxu0 0.0
    %1194 = vmatpush1.msra.mxu0 0.0
    %1195 = vmatprep.subr.mxu0 0.0
    %1196 = vmatpush1.msra.mxu0 0.0
    %1197 = vmatprep.subr.mxu0 0.0
    %1198 = vmatpush1.msra.mxu0 0.0
    %1199 = vmatprep.subr.mxu0 0.0
    %1200 = vmatpush1.msra.mxu0 0.0
    %1201 = vmatprep.subr.mxu0 0.0
    %1202 = vmatpush1.msra.mxu0 0.0
    %1203 = vmatprep.subr.mxu0 0.0
    %1204 = vmatpush1.msra.mxu0 0.0
    %1205 = vmatprep.subr.mxu0 0.0
    %1206 = vmatpush1.msra.mxu0 0.0
    %1207 = vmatprep.subr.mxu0 0.0
    %1208 = vmatpush1.msra.mxu0 0.0
    %1209 = vmatprep.subr.mxu0 0.0
    %1210 = vmatpush1.msra.mxu0 0.0
    %1211 = vmatprep.subr.mxu0 0.0
    %1212 = vmatpush1.msra.mxu0 0.0
    %1213 = vmatprep.subr.mxu0 0.0
    %1214 = vmatpush1.msra.mxu0 0.0
    %1215 = vmatprep.subr.mxu0 0.0
    %1216 = vmatpush1.msra.mxu0 0.0
    %1217 = vmatprep.subr.mxu0 0.0
    %1218 = vmatpush1.msra.mxu0 0.0
    %1219 = vmatprep.subr.mxu0 0.0
    %1220 = vmatpush1.msra.mxu0 0.0
    %1221 = vmatprep.subr.mxu0 0.0
    %1222 = vmatpush1.msra.mxu0 0.0
    %1223 = vmatprep.subr.mxu0 0.0
    %1224 = vmatpush1.msra.mxu0 0.0
    %1225 = vmatprep.subr.mxu0 0.0
    %1226 = vmatpush1.msra.mxu0 0.0
    %1227 = vmatprep.subr.mxu0 0.0
    %1228 = vmatpush1.msra.mxu0 0.0
    %1229 = vmatprep.subr.mxu0 0.0
    %1230 = vmatpush1.msra.mxu0 0.0
    %1231 = vmatprep.mubr.f32.mxu0 0.0
    %1232 = vmatmul.mubr.f32.gmra.mrb[0].mxu0 %v1165
    %v1233 = vpop.f32.mrb[0].mxu0
    %v1234 = vadd.f32 0.0, %v1233
    %v1235 = vpop.f32.mrb[0].mxu0
    %1236 = vdwg.mxu0
    %v1237 = vadd.f32 %v1163, %v1234
    %v1238 = vxor.u32 %v1237, 2147483648
    %v1239 = vmul.f32 %v1238, 1.442695
    %v1240 = vpow.pop %v1239
    %v1241 = vadd.f32 %v1240, 1.0
    %v1242 = vrcp.pop %v1241
    %v1243 = vmul.f32 1.0, %v1242
    %v1244 = vtanh.pop %v1237
    %1246 = vrot.lane.b32.xlu0 %v1162, 32
    %v1247 = vpop.permute.xlu0 %1246
    %v1249 = vmul.f32 %v1243, %v1247
    %1251 = vrot.lane.b32.xlu0 %v1244, 32
    %v1252 = vpop.permute.xlu0 %1251
    %v1254 = vmul.f32 %v1243, %v1252
    %1256 = vrot.lane.b32.xlu0 %v1254, 32
    %v1257 = vpop.permute.xlu0 %1256
    %v1259 = vadd.f32 %v1249, %v1257
    %v1260 = vtanh.pop %v1259
    %1262 = vrot.lane.b32.xlu0 %v1260, 32
    %v1263 = vpop.permute.xlu0 %1262
    %v1265 = vmul.f32 %v1243, %v1263
    %1267 = vrot.lane.b32.xlu0 %v1265, 64
    %v1268 = vpop.permute.xlu0 %1267
    %1270 = vst.msk [vmem:[#allocation3] sm:$0x3] %vm330, %v1268
    %v1271 = vld [vmem:[#allocation2 + $0x2] sm:$0x3]
    %v1272 = vsel %vm223, %v1268, 0
    %1274 = vmatprep.subr.mxu0 0.0
    %1275 = vmatpush1.msra.mxu0 %v1155
    %1276 = vmatprep.subr.mxu0 0.0
    %1277 = vmatpush1.msra.mxu0 %v1156
    %1278 = vmatprep.subr.mxu0 0.0
    %1279 = vmatpush1.msra.mxu0 %v1157
    %1280 = vmatprep.subr.mxu0 0.0
    %1281 = vmatpush1.msra.mxu0 %v1158
    %1282 = vmatprep.subr.mxu0 0.0
    %1283 = vmatpush1.msra.mxu0 0.0
    %1284 = vmatprep.subr.mxu0 0.0
    %1285 = vmatpush1.msra.mxu0 0.0
    %1286 = vmatprep.subr.mxu0 0.0
    %1287 = vmatpush1.msra.mxu0 0.0
    %1288 = vmatprep.subr.mxu0 0.0
    %1289 = vmatpush1.msra.mxu0 0.0
    %1290 = vmatprep.subr.mxu0 0.0
    %1291 = vmatpush1.msra.mxu0 0.0
    %1292 = vmatprep.subr.mxu0 0.0
    %1293 = vmatpush1.msra.mxu0 0.0
    %1294 = vmatprep.subr.mxu0 0.0
    %1295 = vmatpush1.msra.mxu0 0.0
    %1296 = vmatprep.subr.mxu0 0.0
    %1297 = vmatpush1.msra.mxu0 0.0
    %1298 = vmatprep.subr.mxu0 0.0
    %1299 = vmatpush1.msra.mxu0 0.0
    %1300 = vmatprep.subr.mxu0 0.0
    %1301 = vmatpush1.msra.mxu0 0.0
    %1302 = vmatprep.subr.mxu0 0.0
    %1303 = vmatpush1.msra.mxu0 0.0
    %1304 = vmatprep.subr.mxu0 0.0
    %1305 = vmatpush1.msra.mxu0 0.0
    %1306 = vmatprep.subr.mxu0 0.0
    %1307 = vmatpush1.msra.mxu0 0.0
    %1308 = vmatprep.subr.mxu0 0.0
    %1309 = vmatpush1.msra.mxu0 0.0
    %1310 = vmatprep.subr.mxu0 0.0
    %1311 = vmatpush1.msra.mxu0 0.0
    %1312 = vmatprep.subr.mxu0 0.0
    %1313 = vmatpush1.msra.mxu0 0.0
    %1314 = vmatprep.subr.mxu0 0.0
    %1315 = vmatpush1.msra.mxu0 0.0
    %1316 = vmatprep.subr.mxu0 0.0
    %1317 = vmatpush1.msra.mxu0 0.0
    %1318 = vmatprep.subr.mxu0 0.0
    %1319 = vmatpush1.msra.mxu0 0.0
    %1320 = vmatprep.subr.mxu0 0.0
    %1321 = vmatpush1.msra.mxu0 0.0
    %1322 = vmatprep.subr.mxu0 0.0
    %1323 = vmatpush1.msra.mxu0 0.0
    %1324 = vmatprep.subr.mxu0 0.0
    %1325 = vmatpush1.msra.mxu0 0.0
    %1326 = vmatprep.subr.mxu0 0.0
    %1327 = vmatpush1.msra.mxu0 0.0
    %1328 = vmatprep.subr.mxu0 0.0
    %1329 = vmatpush1.msra.mxu0 0.0
    %1330 = vmatprep.subr.mxu0 0.0
    %1331 = vmatpush1.msra.mxu0 0.0
    %1332 = vmatprep.subr.mxu0 0.0
    %1333 = vmatpush1.msra.mxu0 0.0
    %1334 = vmatprep.subr.mxu0 0.0
    %1335 = vmatpush1.msra.mxu0 0.0
    %1336 = vmatprep.subr.mxu0 0.0
    %1337 = vmatpush1.msra.mxu0 0.0
    %1338 = vmatprep.mubr.f32.mxu0 0.0
    %1339 = vmatmul.mubr.f32.gmra.mrb[0].mxu0 %v1272
    %v1340 = vpop.f32.mrb[0].mxu0
    %v1341 = vadd.f32 0.0, %v1340
    %v1342 = vpop.f32.mrb[0].mxu0
    %1343 = vdwg.mxu0
    %v1344 = vadd.f32 %v1271, %v1341
    %v1345 = vxor.u32 %v1344, 2147483648
    %v1346 = vmul.f32 %v1345, 1.442695
    %v1347 = vpow.pop %v1346
    %v1348 = vadd.f32 %v1347, 1.0
    %v1349 = vrcp.pop %v1348
    %v1350 = vmul.f32 1.0, %v1349
    %v1351 = vtanh.pop %v1344
    %v1352 = vmul.f32 %v1350, %v1259
    %1354 = vrot.lane.b32.xlu0 %v1351, 32
    %v1355 = vpop.permute.xlu0 %1354
    %v1357 = vmul.f32 %v1350, %v1355
    %1359 = vrot.lane.b32.xlu0 %v1357, 32
    %v1360 = vpop.permute.xlu0 %1359
    %v1362 = vadd.f32 %v1352, %v1360
    %v1363 = vtanh.pop %v1362
    %1365 = vrot.lane.b32.xlu0 %v1363, 32
    %v1366 = vpop.permute.xlu0 %1365
    %v1368 = vmul.f32 %v1350, %v1366
    %1370 = vrot.lane.b32.xlu0 %v1368, 64
    %v1371 = vpop.permute.xlu0 %1370
    %1373 = vst.msk [vmem:[#allocation3 + $0x2] sm:$0x3] %vm330, %v1371
    %v1374 = vld [vmem:[#allocation2 + $0x4] sm:$0x3]
    %v1375 = vsel %vm223, %v1371, 0
    %1377 = vmatprep.subr.mxu0 0.0
    %1378 = vmatpush1.msra.mxu0 %v1155
    %1379 = vmatprep.subr.mxu0 0.0
    %1380 = vmatpush1.msra.mxu0 %v1156
    %1381 = vmatprep.subr.mxu0 0.0
    %1382 = vmatpush1.msra.mxu0 %v1157
    %1383 = vmatprep.subr.mxu0 0.0
    %1384 = vmatpush1.msra.mxu0 %v1158
    %1385 = vmatprep.subr.mxu0 0.0
    %1386 = vmatpush1.msra.mxu0 0.0
    %1387 = vmatprep.subr.mxu0 0.0
    %1388 = vmatpush1.msra.mxu0 0.0
    %1389 = vmatprep.subr.mxu0 0.0
    %1390 = vmatpush1.msra.mxu0 0.0
    %1391 = vmatprep.subr.mxu0 0.0
    %1392 = vmatpush1.msra.mxu0 0.0
    %1393 = vmatprep.subr.mxu0 0.0
    %1394 = vmatpush1.msra.mxu0 0.0
    %1395 = vmatprep.subr.mxu0 0.0
    %1396 = vmatpush1.msra.mxu0 0.0
    %1397 = vmatprep.subr.mxu0 0.0
    %1398 = vmatpush1.msra.mxu0 0.0
    %1399 = vmatprep.subr.mxu0 0.0
    %1400 = vmatpush1.msra.mxu0 0.0
    %1401 = vmatprep.subr.mxu0 0.0
    %1402 = vmatpush1.msra.mxu0 0.0
    %1403 = vmatprep.subr.mxu0 0.0
    %1404 = vmatpush1.msra.mxu0 0.0
    %1405 = vmatprep.subr.mxu0 0.0
    %1406 = vmatpush1.msra.mxu0 0.0
    %1407 = vmatprep.subr.mxu0 0.0
    %1408 = vmatpush1.msra.mxu0 0.0
    %1409 = vmatprep.subr.mxu0 0.0
    %1410 = vmatpush1.msra.mxu0 0.0
    %1411 = vmatprep.subr.mxu0 0.0
    %1412 = vmatpush1.msra.mxu0 0.0
    %1413 = vmatprep.subr.mxu0 0.0
    %1414 = vmatpush1.msra.mxu0 0.0
    %1415 = vmatprep.subr.mxu0 0.0
    %1416 = vmatpush1.msra.mxu0 0.0
    %1417 = vmatprep.subr.mxu0 0.0
    %1418 = vmatpush1.msra.mxu0 0.0
    %1419 = vmatprep.subr.mxu0 0.0
    %1420 = vmatpush1.msra.mxu0 0.0
    %1421 = vmatprep.subr.mxu0 0.0
    %1422 = vmatpush1.msra.mxu0 0.0
    %1423 = vmatprep.subr.mxu0 0.0
    %1424 = vmatpush1.msra.mxu0 0.0
    %1425 = vmatprep.subr.mxu0 0.0
    %1426 = vmatpush1.msra.mxu0 0.0
    %1427 = vmatprep.subr.mxu0 0.0
    %1428 = vmatpush1.msra.mxu0 0.0
    %1429 = vmatprep.subr.mxu0 0.0
    %1430 = vmatpush1.msra.mxu0 0.0
    %1431 = vmatprep.subr.mxu0 0.0
    %1432 = vmatpush1.msra.mxu0 0.0
    %1433 = vmatprep.subr.mxu0 0.0
    %1434 = vmatpush1.msra.mxu0 0.0
    %1435 = vmatprep.subr.mxu0 0.0
    %1436 = vmatpush1.msra.mxu0 0.0
    %1437 = vmatprep.subr.mxu0 0.0
    %1438 = vmatpush1.msra.mxu0 0.0
    %1439 = vmatprep.subr.mxu0 0.0
    %1440 = vmatpush1.msra.mxu0 0.0
    %1441 = vmatprep.mubr.f32.mxu0 0.0
    %1442 = vmatmul.mubr.f32.gmra.mrb[0].mxu0 %v1375
    %v1443 = vpop.f32.mrb[0].mxu0
    %v1444 = vadd.f32 0.0, %v1443
    %v1445 = vpop.f32.mrb[0].mxu0
    %1446 = vdwg.mxu0
    %v1447 = vadd.f32 %v1374, %v1444
    %v1448 = vxor.u32 %v1447, 2147483648
    %v1449 = vmul.f32 %v1448, 1.442695
    %v1450 = vpow.pop %v1449
    %v1451 = vadd.f32 %v1450, 1.0
    %v1452 = vrcp.pop %v1451
    %v1453 = vmul.f32 1.0, %v1452
    %v1454 = vtanh.pop %v1447
    %v1455 = vmul.f32 %v1453, %v1362
    %1457 = vrot.lane.b32.xlu0 %v1454, 32
    %v1458 = vpop.permute.xlu0 %1457
    %v1460 = vmul.f32 %v1453, %v1458
    %1462 = vrot.lane.b32.xlu0 %v1460, 32
    %v1463 = vpop.permute.xlu0 %1462
    %v1465 = vadd.f32 %v1455, %v1463
    %v1466 = vtanh.pop %v1465
    %1468 = vrot.lane.b32.xlu0 %v1466, 32
    %v1469 = vpop.permute.xlu0 %1468
    %v1471 = vmul.f32 %v1453, %v1469
    %1473 = vrot.lane.b32.xlu0 %v1471, 64
    %v1474 = vpop.permute.xlu0 %1473
    %1476 = vst.msk [vmem:[#allocation3 + $0x4] sm:$0x3] %vm330, %v1474
    %v1477 = vld [vmem:[#allocation2 + $0x6] sm:$0x3]
    %v1478 = vsel %vm223, %v1474, 0
    %1480 = vmatprep.subr.mxu0 0.0
    %1481 = vmatpush1.msra.mxu0 %v1155
    %1482 = vmatprep.subr.mxu0 0.0
    %1483 = vmatpush1.msra.mxu0 %v1156
    %1484 = vmatprep.subr.mxu0 0.0
    %1485 = vmatpush1.msra.mxu0 %v1157
    %1486 = vmatprep.subr.mxu0 0.0
    %1487 = vmatpush1.msra.mxu0 %v1158
    %1488 = vmatprep.subr.mxu0 0.0
    %1489 = vmatpush1.msra.mxu0 0.0
    %1490 = vmatprep.subr.mxu0 0.0
    %1491 = vmatpush1.msra.mxu0 0.0
    %1492 = vmatprep.subr.mxu0 0.0
    %1493 = vmatpush1.msra.mxu0 0.0
    %1494 = vmatprep.subr.mxu0 0.0
    %1495 = vmatpush1.msra.mxu0 0.0
    %1496 = vmatprep.subr.mxu0 0.0
    %1497 = vmatpush1.msra.mxu0 0.0
    %1498 = vmatprep.subr.mxu0 0.0
    %1499 = vmatpush1.msra.mxu0 0.0
    %1500 = vmatprep.subr.mxu0 0.0
    %1501 = vmatpush1.msra.mxu0 0.0
    %1502 = vmatprep.subr.mxu0 0.0
    %1503 = vmatpush1.msra.mxu0 0.0
    %1504 = vmatprep.subr.mxu0 0.0
    %1505 = vmatpush1.msra.mxu0 0.0
    %1506 = vmatprep.subr.mxu0 0.0
    %1507 = vmatpush1.msra.mxu0 0.0
    %1508 = vmatprep.subr.mxu0 0.0
    %1509 = vmatpush1.msra.mxu0 0.0
    %1510 = vmatprep.subr.mxu0 0.0
    %1511 = vmatpush1.msra.mxu0 0.0
    %1512 = vmatprep.subr.mxu0 0.0
    %1513 = vmatpush1.msra.mxu0 0.0
    %1514 = vmatprep.subr.mxu0 0.0
    %1515 = vmatpush1.msra.mxu0 0.0
    %1516 = vmatprep.subr.mxu0 0.0
    %1517 = vmatpush1.msra.mxu0 0.0
    %1518 = vmatprep.subr.mxu0 0.0
    %1519 = vmatpush1.msra.mxu0 0.0
    %1520 = vmatprep.subr.mxu0 0.0
    %1521 = vmatpush1.msra.mxu0 0.0
    %1522 = vmatprep.subr.mxu0 0.0
    %1523 = vmatpush1.msra.mxu0 0.0
    %1524 = vmatprep.subr.mxu0 0.0
    %1525 = vmatpush1.msra.mxu0 0.0
    %1526 = vmatprep.subr.mxu0 0.0
    %1527 = vmatpush1.msra.mxu0 0.0
    %1528 = vmatprep.subr.mxu0 0.0
    %1529 = vmatpush1.msra.mxu0 0.0
    %1530 = vmatprep.subr.mxu0 0.0
    %1531 = vmatpush1.msra.mxu0 0.0
    %1532 = vmatprep.subr.mxu0 0.0
    %1533 = vmatpush1.msra.mxu0 0.0
    %1534 = vmatprep.subr.mxu0 0.0
    %1535 = vmatpush1.msra.mxu0 0.0
    %1536 = vmatprep.subr.mxu0 0.0
    %1537 = vmatpush1.msra.mxu0 0.0
    %1538 = vmatprep.subr.mxu0 0.0
    %1539 = vmatpush1.msra.mxu0 0.0
    %1540 = vmatprep.subr.mxu0 0.0
    %1541 = vmatpush1.msra.mxu0 0.0
    %1542 = vmatprep.subr.mxu0 0.0
    %1543 = vmatpush1.msra.mxu0 0.0
    %1544 = vmatprep.mubr.f32.mxu0 0.0
    %1545 = vmatmul.mubr.f32.gmra.mrb[0].mxu0 %v1478
    %v1546 = vpop.f32.mrb[0].mxu0
    %v1547 = vadd.f32 0.0, %v1546
    %v1548 = vpop.f32.mrb[0].mxu0
    %1549 = vdwg.mxu0
    %v1550 = vadd.f32 %v1477, %v1547
    %v1551 = vxor.u32 %v1550, 2147483648
    %v1552 = vmul.f32 %v1551, 1.442695
    %v1553 = vpow.pop %v1552
    %v1554 = vadd.f32 %v1553, 1.0
    %v1555 = vrcp.pop %v1554
    %v1556 = vmul.f32 1.0, %v1555
    %v1557 = vtanh.pop %v1550
    %v1558 = vmul.f32 %v1556, %v1465
    %1560 = vrot.lane.b32.xlu0 %v1557, 32
    %v1561 = vpop.permute.xlu0 %1560
    %v1563 = vmul.f32 %v1556, %v1561
    %1565 = vrot.lane.b32.xlu0 %v1563, 32
    %v1566 = vpop.permute.xlu0 %1565
    %v1568 = vadd.f32 %v1558, %v1566
    %v1569 = vtanh.pop %v1568
    %1571 = vrot.lane.b32.xlu0 %v1569, 32
    %v1572 = vpop.permute.xlu0 %1571
    %v1574 = vmul.f32 %v1556, %v1572
    %1576 = vrot.lane.b32.xlu0 %v1574, 64
    %v1577 = vpop.permute.xlu0 %1576
    %1579 = vst.msk [vmem:[#allocation3 + $0x6] sm:$0x3] %vm330, %v1577
    %v1580 = vld [vmem:[#allocation2 + $0x8] sm:$0x3]
    %v1581 = vsel %vm223, %v1577, 0
    %1583 = vmatprep.subr.mxu0 0.0
    %1584 = vmatpush1.msra.mxu0 %v1155
    %1585 = vmatprep.subr.mxu0 0.0
    %1586 = vmatpush1.msra.mxu0 %v1156
    %1587 = vmatprep.subr.mxu0 0.0
    %1588 = vmatpush1.msra.mxu0 %v1157
    %1589 = vmatprep.subr.mxu0 0.0
    %1590 = vmatpush1.msra.mxu0 %v1158
    %1591 = vmatprep.subr.mxu0 0.0
    %1592 = vmatpush1.msra.mxu0 0.0
    %1593 = vmatprep.subr.mxu0 0.0
    %1594 = vmatpush1.msra.mxu0 0.0
    %1595 = vmatprep.subr.mxu0 0.0
    %1596 = vmatpush1.msra.mxu0 0.0
    %1597 = vmatprep.subr.mxu0 0.0
    %1598 = vmatpush1.msra.mxu0 0.0
    %1599 = vmatprep.subr.mxu0 0.0
    %1600 = vmatpush1.msra.mxu0 0.0
    %1601 = vmatprep.subr.mxu0 0.0
    %1602 = vmatpush1.msra.mxu0 0.0
    %1603 = vmatprep.subr.mxu0 0.0
    %1604 = vmatpush1.msra.mxu0 0.0
    %1605 = vmatprep.subr.mxu0 0.0
    %1606 = vmatpush1.msra.mxu0 0.0
    %1607 = vmatprep.subr.mxu0 0.0
    %1608 = vmatpush1.msra.mxu0 0.0
    %1609 = vmatprep.subr.mxu0 0.0
    %1610 = vmatpush1.msra.mxu0 0.0
    %1611 = vmatprep.subr.mxu0 0.0
    %1612 = vmatpush1.msra.mxu0 0.0
    %1613 = vmatprep.subr.mxu0 0.0
    %1614 = vmatpush1.msra.mxu0 0.0
    %1615 = vmatprep.subr.mxu0 0.0
    %1616 = vmatpush1.msra.mxu0 0.0
    %1617 = vmatprep.subr.mxu0 0.0
    %1618 = vmatpush1.msra.mxu0 0.0
    %1619 = vmatprep.subr.mxu0 0.0
    %1620 = vmatpush1.msra.mxu0 0.0
    %1621 = vmatprep.subr.mxu0 0.0
    %1622 = vmatpush1.msra.mxu0 0.0
    %1623 = vmatprep.subr.mxu0 0.0
    %1624 = vmatpush1.msra.mxu0 0.0
    %1625 = vmatprep.subr.mxu0 0.0
    %1626 = vmatpush1.msra.mxu0 0.0
    %1627 = vmatprep.subr.mxu0 0.0
    %1628 = vmatpush1.msra.mxu0 0.0
    %1629 = vmatprep.subr.mxu0 0.0
    %1630 = vmatpush1.msra.mxu0 0.0
    %1631 = vmatprep.subr.mxu0 0.0
    %1632 = vmatpush1.msra.mxu0 0.0
    %1633 = vmatprep.subr.mxu0 0.0
    %1634 = vmatpush1.msra.mxu0 0.0
    %1635 = vmatprep.subr.mxu0 0.0
    %1636 = vmatpush1.msra.mxu0 0.0
    %1637 = vmatprep.subr.mxu0 0.0
    %1638 = vmatpush1.msra.mxu0 0.0
    %1639 = vmatprep.subr.mxu0 0.0
    %1640 = vmatpush1.msra.mxu0 0.0
    %1641 = vmatprep.subr.mxu0 0.0
    %1642 = vmatpush1.msra.mxu0 0.0
    %1643 = vmatprep.subr.mxu0 0.0
    %1644 = vmatpush1.msra.mxu0 0.0
    %1645 = vmatprep.subr.mxu0 0.0
    %1646 = vmatpush1.msra.mxu0 0.0
    %1647 = vmatprep.mubr.f32.mxu0 0.0
    %1648 = vmatmul.mubr.f32.gmra.mrb[0].mxu0 %v1581
    %v1649 = vpop.f32.mrb[0].mxu0
    %v1650 = vadd.f32 0.0, %v1649
    %v1651 = vpop.f32.mrb[0].mxu0
    %1652 = vdwg.mxu0
    %v1653 = vadd.f32 %v1580, %v1650
    %v1654 = vxor.u32 %v1653, 2147483648
    %v1655 = vmul.f32 %v1654, 1.442695
    %v1656 = vpow.pop %v1655
    %v1657 = vadd.f32 %v1656, 1.0
    %v1658 = vrcp.pop %v1657
    %v1659 = vmul.f32 1.0, %v1658
    %v1660 = vtanh.pop %v1653
    %v1661 = vmul.f32 %v1659, %v1568
    %1663 = vrot.lane.b32.xlu0 %v1660, 32
    %v1664 = vpop.permute.xlu0 %1663
    %v1666 = vmul.f32 %v1659, %v1664
    %1668 = vrot.lane.b32.xlu0 %v1666, 32
    %v1669 = vpop.permute.xlu0 %1668
    %v1671 = vadd.f32 %v1661, %v1669
    %v1672 = vtanh.pop %v1671
    %1674 = vrot.lane.b32.xlu0 %v1672, 32
    %v1675 = vpop.permute.xlu0 %1674
    %v1677 = vmul.f32 %v1659, %v1675
    %1679 = vrot.lane.b32.xlu0 %v1677, 64
    %v1680 = vpop.permute.xlu0 %1679
    %1682 = vst.msk [vmem:[#allocation3 + $0x8] sm:$0x3] %vm330, %v1680
    %v1683 = vld [vmem:[#allocation2 + $0xa] sm:$0x3]
    %v1684 = vsel %vm223, %v1680, 0
    %1686 = vmatprep.subr.mxu0 0.0
    %1687 = vmatpush1.msra.mxu0 %v1155
    %1688 = vmatprep.subr.mxu0 0.0
    %1689 = vmatpush1.msra.mxu0 %v1156
    %1690 = vmatprep.subr.mxu0 0.0
    %1691 = vmatpush1.msra.mxu0 %v1157
    %1692 = vmatprep.subr.mxu0 0.0
    %1693 = vmatpush1.msra.mxu0 %v1158
    %1694 = vmatprep.subr.mxu0 0.0
    %1695 = vmatpush1.msra.mxu0 0.0
    %1696 = vmatprep.subr.mxu0 0.0
    %1697 = vmatpush1.msra.mxu0 0.0
    %1698 = vmatprep.subr.mxu0 0.0
    %1699 = vmatpush1.msra.mxu0 0.0
    %1700 = vmatprep.subr.mxu0 0.0
    %1701 = vmatpush1.msra.mxu0 0.0
    %1702 = vmatprep.subr.mxu0 0.0
    %1703 = vmatpush1.msra.mxu0 0.0
    %1704 = vmatprep.subr.mxu0 0.0
    %1705 = vmatpush1.msra.mxu0 0.0
    %1706 = vmatprep.subr.mxu0 0.0
    %1707 = vmatpush1.msra.mxu0 0.0
    %1708 = vmatprep.subr.mxu0 0.0
    %1709 = vmatpush1.msra.mxu0 0.0
    %1710 = vmatprep.subr.mxu0 0.0
    %1711 = vmatpush1.msra.mxu0 0.0
    %1712 = vmatprep.subr.mxu0 0.0
    %1713 = vmatpush1.msra.mxu0 0.0
    %1714 = vmatprep.subr.mxu0 0.0
    %1715 = vmatpush1.msra.mxu0 0.0
    %1716 = vmatprep.subr.mxu0 0.0
    %1717 = vmatpush1.msra.mxu0 0.0
    %1718 = vmatprep.subr.mxu0 0.0
    %1719 = vmatpush1.msra.mxu0 0.0
    %1720 = vmatprep.subr.mxu0 0.0
    %1721 = vmatpush1.msra.mxu0 0.0
    %1722 = vmatprep.subr.mxu0 0.0
    %1723 = vmatpush1.msra.mxu0 0.0
    %1724 = vmatprep.subr.mxu0 0.0
    %1725 = vmatpush1.msra.mxu0 0.0
    %1726 = vmatprep.subr.mxu0 0.0
    %1727 = vmatpush1.msra.mxu0 0.0
    %1728 = vmatprep.subr.mxu0 0.0
    %1729 = vmatpush1.msra.mxu0 0.0
    %1730 = vmatprep.subr.mxu0 0.0
    %1731 = vmatpush1.msra.mxu0 0.0
    %1732 = vmatprep.subr.mxu0 0.0
    %1733 = vmatpush1.msra.mxu0 0.0
    %1734 = vmatprep.subr.mxu0 0.0
    %1735 = vmatpush1.msra.mxu0 0.0
    %1736 = vmatprep.subr.mxu0 0.0
    %1737 = vmatpush1.msra.mxu0 0.0
    %1738 = vmatprep.subr.mxu0 0.0
    %1739 = vmatpush1.msra.mxu0 0.0
    %1740 = vmatprep.subr.mxu0 0.0
    %1741 = vmatpush1.msra.mxu0 0.0
    %1742 = vmatprep.subr.mxu0 0.0
    %1743 = vmatpush1.msra.mxu0 0.0
    %1744 = vmatprep.subr.mxu0 0.0
    %1745 = vmatpush1.msra.mxu0 0.0
    %1746 = vmatprep.subr.mxu0 0.0
    %1747 = vmatpush1.msra.mxu0 0.0
    %1748 = vmatprep.subr.mxu0 0.0
    %1749 = vmatpush1.msra.mxu0 0.0
    %1750 = vmatprep.mubr.f32.mxu0 0.0
    %1751 = vmatmul.mubr.f32.gmra.mrb[0].mxu0 %v1684
    %v1752 = vpop.f32.mrb[0].mxu0
    %v1753 = vadd.f32 0.0, %v1752
    %v1754 = vpop.f32.mrb[0].mxu0
    %1755 = vdwg.mxu0
    %v1756 = vadd.f32 %v1683, %v1753
    %v1757 = vxor.u32 %v1756, 2147483648
    %v1758 = vmul.f32 %v1757, 1.442695
    %v1759 = vpow.pop %v1758
    %v1760 = vadd.f32 %v1759, 1.0
    %v1761 = vrcp.pop %v1760
    %v1762 = vmul.f32 1.0, %v1761
    %v1763 = vtanh.pop %v1756
    %v1764 = vmul.f32 %v1762, %v1671
    %1766 = vrot.lane.b32.xlu0 %v1763, 32
    %v1767 = vpop.permute.xlu0 %1766
    %v1769 = vmul.f32 %v1762, %v1767
    %1771 = vrot.lane.b32.xlu0 %v1769, 32
    %v1772 = vpop.permute.xlu0 %1771
    %v1774 = vadd.f32 %v1764, %v1772
    %v1775 = vtanh.pop %v1774
    %1777 = vrot.lane.b32.xlu0 %v1775, 32
    %v1778 = vpop.permute.xlu0 %1777
    %v1780 = vmul.f32 %v1762, %v1778
    %1782 = vrot.lane.b32.xlu0 %v1780, 64
    %v1783 = vpop.permute.xlu0 %1782
    %1785 = vst.msk [vmem:[#allocation3 + $0xa] sm:$0x3] %vm330, %v1783
    %v1786 = vld [vmem:[#allocation2 + $0xc] sm:$0x3]
    %v1787 = vsel %vm223, %v1783, 0
    %1789 = vmatprep.subr.mxu0 0.0
    %1790 = vmatpush1.msra.mxu0 %v1155
    %1791 = vmatprep.subr.mxu0 0.0
    %1792 = vmatpush1.msra.mxu0 %v1156
    %1793 = vmatprep.subr.mxu0 0.0
    %1794 = vmatpush1.msra.mxu0 %v1157
    %1795 = vmatprep.subr.mxu0 0.0
    %1796 = vmatpush1.msra.mxu0 %v1158
    %1797 = vmatprep.subr.mxu0 0.0
    %1798 = vmatpush1.msra.mxu0 0.0
    %1799 = vmatprep.subr.mxu0 0.0
    %1800 = vmatpush1.msra.mxu0 0.0
    %1801 = vmatprep.subr.mxu0 0.0
    %1802 = vmatpush1.msra.mxu0 0.0
    %1803 = vmatprep.subr.mxu0 0.0
    %1804 = vmatpush1.msra.mxu0 0.0
    %1805 = vmatprep.subr.mxu0 0.0
    %1806 = vmatpush1.msra.mxu0 0.0
    %1807 = vmatprep.subr.mxu0 0.0
    %1808 = vmatpush1.msra.mxu0 0.0
    %1809 = vmatprep.subr.mxu0 0.0
    %1810 = vmatpush1.msra.mxu0 0.0
    %1811 = vmatprep.subr.mxu0 0.0
    %1812 = vmatpush1.msra.mxu0 0.0
    %1813 = vmatprep.subr.mxu0 0.0
    %1814 = vmatpush1.msra.mxu0 0.0
    %1815 = vmatprep.subr.mxu0 0.0
    %1816 = vmatpush1.msra.mxu0 0.0
    %1817 = vmatprep.subr.mxu0 0.0
    %1818 = vmatpush1.msra.mxu0 0.0
    %1819 = vmatprep.subr.mxu0 0.0
    %1820 = vmatpush1.msra.mxu0 0.0
    %1821 = vmatprep.subr.mxu0 0.0
    %1822 = vmatpush1.msra.mxu0 0.0
    %1823 = vmatprep.subr.mxu0 0.0
    %1824 = vmatpush1.msra.mxu0 0.0
    %1825 = vmatprep.subr.mxu0 0.0
    %1826 = vmatpush1.msra.mxu0 0.0
    %1827 = vmatprep.subr.mxu0 0.0
    %1828 = vmatpush1.msra.mxu0 0.0
    %1829 = vmatprep.subr.mxu0 0.0
    %1830 = vmatpush1.msra.mxu0 0.0
    %1831 = vmatprep.subr.mxu0 0.0
    %1832 = vmatpush1.msra.mxu0 0.0
    %1833 = vmatprep.subr.mxu0 0.0
    %1834 = vmatpush1.msra.mxu0 0.0
    %1835 = vmatprep.subr.mxu0 0.0
    %1836 = vmatpush1.msra.mxu0 0.0
    %1837 = vmatprep.subr.mxu0 0.0
    %1838 = vmatpush1.msra.mxu0 0.0
    %1839 = vmatprep.subr.mxu0 0.0
    %1840 = vmatpush1.msra.mxu0 0.0
    %1841 = vmatprep.subr.mxu0 0.0
    %1842 = vmatpush1.msra.mxu0 0.0
    %1843 = vmatprep.subr.mxu0 0.0
    %1844 = vmatpush1.msra.mxu0 0.0
    %1845 = vmatprep.subr.mxu0 0.0
    %1846 = vmatpush1.msra.mxu0 0.0
    %1847 = vmatprep.subr.mxu0 0.0
    %1848 = vmatpush1.msra.mxu0 0.0
    %1849 = vmatprep.subr.mxu0 0.0
    %1850 = vmatpush1.msra.mxu0 0.0
    %1851 = vmatprep.subr.mxu0 0.0
    %1852 = vmatpush1.msra.mxu0 0.0
    %1853 = vmatprep.mubr.f32.mxu0 0.0
    %1854 = vmatmul.mubr.f32.gmra.mrb[0].mxu0 %v1787
    %v1855 = vpop.f32.mrb[0].mxu0
    %v1856 = vadd.f32 0.0, %v1855
    %v1857 = vpop.f32.mrb[0].mxu0
    %1858 = vdwg.mxu0
    %v1859 = vadd.f32 %v1786, %v1856
    %v1860 = vxor.u32 %v1859, 2147483648
    %v1861 = vmul.f32 %v1860, 1.442695
    %v1862 = vpow.pop %v1861
    %v1863 = vadd.f32 %v1862, 1.0
    %v1864 = vrcp.pop %v1863
    %v1865 = vmul.f32 1.0, %v1864
    %v1866 = vtanh.pop %v1859
    %v1867 = vmul.f32 %v1865, %v1774
    %1869 = vrot.lane.b32.xlu0 %v1866, 32
    %v1870 = vpop.permute.xlu0 %1869
    %v1872 = vmul.f32 %v1865, %v1870
    %1874 = vrot.lane.b32.xlu0 %v1872, 32
    %v1875 = vpop.permute.xlu0 %1874
    %v1877 = vadd.f32 %v1867, %v1875
    %v1878 = vtanh.pop %v1877
    %1880 = vrot.lane.b32.xlu0 %v1878, 32
    %v1881 = vpop.permute.xlu0 %1880
    %v1883 = vmul.f32 %v1865, %v1881
    %1885 = vrot.lane.b32.xlu0 %v1883, 64
    %v1886 = vpop.permute.xlu0 %1885
    %1888 = vst.msk [vmem:[#allocation3 + $0xc] sm:$0x3] %vm330, %v1886
    %v1889 = vld [vmem:[#allocation2 + $0xe] sm:$0x3]
    %v1890 = vsel %vm223, %v1886, 0
    %1892 = vmatprep.subr.mxu0 0.0
    %1893 = vmatpush1.msra.mxu0 %v1155
    %1894 = vmatprep.subr.mxu0 0.0
    %1895 = vmatpush1.msra.mxu0 %v1156
    %1896 = vmatprep.subr.mxu0 0.0
    %1897 = vmatpush1.msra.mxu0 %v1157
    %1898 = vmatprep.subr.mxu0 0.0
    %1899 = vmatpush1.msra.mxu0 %v1158
    %1900 = vmatprep.subr.mxu0 0.0
    %1901 = vmatpush1.msra.mxu0 0.0
    %1902 = vmatprep.subr.mxu0 0.0
    %1903 = vmatpush1.msra.mxu0 0.0
    %1904 = vmatprep.subr.mxu0 0.0
    %1905 = vmatpush1.msra.mxu0 0.0
    %1906 = vmatprep.subr.mxu0 0.0
    %1907 = vmatpush1.msra.mxu0 0.0
    %1908 = vmatprep.subr.mxu0 0.0
    %1909 = vmatpush1.msra.mxu0 0.0
    %1910 = vmatprep.subr.mxu0 0.0
    %1911 = vmatpush1.msra.mxu0 0.0
    %1912 = vmatprep.subr.mxu0 0.0
    %1913 = vmatpush1.msra.mxu0 0.0
    %1914 = vmatprep.subr.mxu0 0.0
    %1915 = vmatpush1.msra.mxu0 0.0
    %1916 = vmatprep.subr.mxu0 0.0
    %1917 = vmatpush1.msra.mxu0 0.0
    %1918 = vmatprep.subr.mxu0 0.0
    %1919 = vmatpush1.msra.mxu0 0.0
    %1920 = vmatprep.subr.mxu0 0.0
    %1921 = vmatpush1.msra.mxu0 0.0
    %1922 = vmatprep.subr.mxu0 0.0
    %1923 = vmatpush1.msra.mxu0 0.0
    %1924 = vmatprep.subr.mxu0 0.0
    %1925 = vmatpush1.msra.mxu0 0.0
    %1926 = vmatprep.subr.mxu0 0.0
    %1927 = vmatpush1.msra.mxu0 0.0
    %1928 = vmatprep.subr.mxu0 0.0
    %1929 = vmatpush1.msra.mxu0 0.0
    %1930 = vmatprep.subr.mxu0 0.0
    %1931 = vmatpush1.msra.mxu0 0.0
    %1932 = vmatprep.subr.mxu0 0.0
    %1933 = vmatpush1.msra.mxu0 0.0
    %1934 = vmatprep.subr.mxu0 0.0
    %1935 = vmatpush1.msra.mxu0 0.0
    %1936 = vmatprep.subr.mxu0 0.0
    %1937 = vmatpush1.msra.mxu0 0.0
    %1938 = vmatprep.subr.mxu0 0.0
    %1939 = vmatpush1.msra.mxu0 0.0
    %1940 = vmatprep.subr.mxu0 0.0
    %1941 = vmatpush1.msra.mxu0 0.0
    %1942 = vmatprep.subr.mxu0 0.0
    %1943 = vmatpush1.msra.mxu0 0.0
    %1944 = vmatprep.subr.mxu0 0.0
    %1945 = vmatpush1.msra.mxu0 0.0
    %1946 = vmatprep.subr.mxu0 0.0
    %1947 = vmatpush1.msra.mxu0 0.0
    %1948 = vmatprep.subr.mxu0 0.0
    %1949 = vmatpush1.msra.mxu0 0.0
    %1950 = vmatprep.subr.mxu0 0.0
    %1951 = vmatpush1.msra.mxu0 0.0
    %1952 = vmatprep.subr.mxu0 0.0
    %1953 = vmatpush1.msra.mxu0 0.0
    %1954 = vmatprep.subr.mxu0 0.0
    %1955 = vmatpush1.msra.mxu0 0.0
    %1956 = vmatprep.mubr.f32.mxu0 0.0
    %1957 = vmatmul.mubr.f32.gmra.mrb[0].mxu0 %v1890
    %v1958 = vpop.f32.mrb[0].mxu0
    %v1959 = vadd.f32 0.0, %v1958
    %v1960 = vpop.f32.mrb[0].mxu0
    %1961 = vdwg.mxu0
    %v1962 = vadd.f32 %v1889, %v1959
    %v1963 = vxor.u32 %v1962, 2147483648
    %v1964 = vmul.f32 %v1963, 1.442695
    %v1965 = vpow.pop %v1964
    %v1966 = vadd.f32 %v1965, 1.0
    %v1967 = vrcp.pop %v1966
    %v1968 = vmul.f32 1.0, %v1967
    %v1969 = vtanh.pop %v1962
    %v1970 = vmul.f32 %v1968, %v1877
    %1972 = vrot.lane.b32.xlu0 %v1969, 32
    %v1973 = vpop.permute.xlu0 %1972
    %v1975 = vmul.f32 %v1968, %v1973
    %1977 = vrot.lane.b32.xlu0 %v1975, 32
    %v1978 = vpop.permute.xlu0 %1977
    %v1980 = vadd.f32 %v1970, %v1978
    %v1981 = vtanh.pop %v1980
    %1983 = vrot.lane.b32.xlu0 %v1981, 32
    %v1984 = vpop.permute.xlu0 %1983
    %v1986 = vmul.f32 %v1968, %v1984
    %1988 = vrot.lane.b32.xlu0 %v1986, 64
    %v1989 = vpop.permute.xlu0 %1988
    %1991 = vst.msk [vmem:[#allocation3 + $0xe] sm:$0x3] %vm330, %v1989
    %s1992 = scalar_lea.vmem [#allocation15], 2
    %1993 = vst.msk [vmem:[%s1992] sm:$0x3] %vm330, %v1989
    %1995 = vrot.lane.b32.xlu0 %v1980, 96
    %v1996 = vpop.permute.xlu0 %1995
    %s1998 = scalar_lea.vmem [#allocation16], 2
    %1999 = vst.msk [vmem:[%s1998] sm:$0x3] %vm330, %v1996
    %v2000 = vld [vmem:[#allocation3] sm:$0xff]
    %v2001 = vld [vmem:[#allocation3 + $0x8] sm:$0xff]
    %2002 = vst.msk [vmem:[%s12] sm:$0xff] %vm223, %v2000
    %2003 = vst.msk [vmem:[%s12 + $0x8] sm:$0xff] %vm223, %v2001
    %v2004 = vld [vmem:[%s7] sm:$0xff]
    %v2005 = vld [vmem:[%s7 + $0x8] sm:$0xff]
    %v2006 = vld [vmem:[%s7 + $0x10] sm:$0xff]
    %v2007 = vld [vmem:[%s7 + $0x18] sm:$0xff]
    %v2008 = vld [vmem:[%s8] sm:$0x1]
    %v2010 = vlaneseq
    %v2011 = vshrl.u32 %v2010, 7
    %v2012 = vsub.s32 0, %v2011
    %v2013 = vrot.slane %v2008, %v2012
    %v2016 = vsel %vm223, %v2000, 0
    %v2019 = vsel %vm223, %v2001, 0
    %2021 = vmatprep.subr.mxu0 0.0
    %2022 = vmatpush1.msra.mxu0 %v2004
    %2023 = vmatprep.subr.mxu0 0.0
    %2024 = vmatpush1.msra.mxu0 %v2005
    %2025 = vmatprep.subr.mxu0 0.0
    %2026 = vmatpush1.msra.mxu0 %v2006
    %2027 = vmatprep.subr.mxu0 0.0
    %2028 = vmatpush1.msra.mxu0 %v2007
    %2029 = vmatprep.subr.mxu0 0.0
    %2030 = vmatpush1.msra.mxu0 0.0
    %2031 = vmatprep.subr.mxu0 0.0
    %2032 = vmatpush1.msra.mxu0 0.0
    %2033 = vmatprep.subr.mxu0 0.0
    %2034 = vmatpush1.msra.mxu0 0.0
    %2035 = vmatprep.subr.mxu0 0.0
    %2036 = vmatpush1.msra.mxu0 0.0
    %2037 = vmatprep.subr.mxu0 0.0
    %2038 = vmatpush1.msra.mxu0 0.0
    %2039 = vmatprep.subr.mxu0 0.0
    %2040 = vmatpush1.msra.mxu0 0.0
    %2041 = vmatprep.subr.mxu0 0.0
    %2042 = vmatpush1.msra.mxu0 0.0
    %2043 = vmatprep.subr.mxu0 0.0
    %2044 = vmatpush1.msra.mxu0 0.0
    %2045 = vmatprep.subr.mxu0 0.0
    %2046 = vmatpush1.msra.mxu0 0.0
    %2047 = vmatprep.subr.mxu0 0.0
    %2048 = vmatpush1.msra.mxu0 0.0
    %2049 = vmatprep.subr.mxu0 0.0
    %2050 = vmatpush1.msra.mxu0 0.0
    %2051 = vmatprep.subr.mxu0 0.0
    %2052 = vmatpush1.msra.mxu0 0.0
    %2053 = vmatprep.subr.mxu0 0.0
    %2054 = vmatpush1.msra.mxu0 0.0
    %2055 = vmatprep.subr.mxu0 0.0
    %2056 = vmatpush1.msra.mxu0 0.0
    %2057 = vmatprep.subr.mxu0 0.0
    %2058 = vmatpush1.msra.mxu0 0.0
    %2059 = vmatprep.subr.mxu0 0.0
    %2060 = vmatpush1.msra.mxu0 0.0
    %2061 = vmatprep.subr.mxu0 0.0
    %2062 = vmatpush1.msra.mxu0 0.0
    %2063 = vmatprep.subr.mxu0 0.0
    %2064 = vmatpush1.msra.mxu0 0.0
    %2065 = vmatprep.subr.mxu0 0.0
    %2066 = vmatpush1.msra.mxu0 0.0
    %2067 = vmatprep.subr.mxu0 0.0
    %2068 = vmatpush1.msra.mxu0 0.0
    %2069 = vmatprep.subr.mxu0 0.0
    %2070 = vmatpush1.msra.mxu0 0.0
    %2071 = vmatprep.subr.mxu0 0.0
    %2072 = vmatpush1.msra.mxu0 0.0
    %2073 = vmatprep.subr.mxu0 0.0
    %2074 = vmatpush1.msra.mxu0 0.0
    %2075 = vmatprep.subr.mxu0 0.0
    %2076 = vmatpush1.msra.mxu0 0.0
    %2077 = vmatprep.subr.mxu0 0.0
    %2078 = vmatpush1.msra.mxu0 0.0
    %2079 = vmatprep.subr.mxu0 0.0
    %2080 = vmatpush1.msra.mxu0 0.0
    %2081 = vmatprep.subr.mxu0 0.0
    %2082 = vmatpush1.msra.mxu0 0.0
    %2083 = vmatprep.subr.mxu0 0.0
    %2084 = vmatpush1.msra.mxu0 0.0
    %2085 = vmatprep.mubr.f32.mxu0 0.0
    %2086 = vmatmul.mubr.f32.gmra.mrb[0].mxu0 %v2016
    %v2087 = vpop.f32.mrb[0].mxu0
    %v2088 = vadd.f32 %v2013, %v2087
    %v2089 = vpop.f32.mrb[0].mxu0
    %2090 = vmatprep.mubr.f32.mxu0 0.0
    %2091 = vmatmul.mubr.f32.gmra.mrb[0].mxu0 %v2019
    %v2092 = vpop.f32.mrb[0].mxu0
    %v2093 = vadd.f32 %v2013, %v2092
    %v2094 = vpop.f32.mrb[0].mxu0
    %2095 = vdwg.mxu0
    %v2096 = vxor.u32 %v2088, 2147483648
    %v2097 = vxor.u32 %v2093, 2147483648
    %v2098 = vmul.f32 %v2096, 1.442695
    %v2099 = vpow.pop %v2098
    %v2100 = vmul.f32 %v2097, 1.442695
    %v2101 = vpow.pop %v2100
    %v2102 = vadd.f32 %v2099, 1.0
    %v2103 = vadd.f32 %v2101, 1.0
    %v2104 = vrcp.pop %v2102
    %v2105 = vmul.f32 1.0, %v2104
    %v2106 = vrcp.pop %v2103
    %v2107 = vmul.f32 1.0, %v2106
    %vm2108 = vcmask 23552
    %2109 = vst.msk [vmem:[%s11] sm:$0xff] %vm2108, %v2105
    %2110 = vst.msk [vmem:[%s11 + $0x8] sm:$0xff] %vm2108, %v2107
    // Predicated region
    $region70: #{_lambda_.1} parent=1 // pred_check
      _
    $region71: #{_lambda_.1} parent=1 // pred_check_branch
      %2112 = sbr.rel (0) target = $region73
    $region72: #{_lambda_.1} parent=1 // pred_region
      _
    $region73: #{_lambda_.1} parent=1 // pred_fallthru
      _
    // Predicated region
    $region74: #{_lambda_.1} parent=1 // pred_check
      _
    $region75: #{_lambda_.1} parent=1 // pred_check_branch
      %2114 = sbr.rel (0) target = $region77
    $region76: #{_lambda_.1} parent=1 // pred_region
      _
    $region77: #{_lambda_.1} parent=1 // pred_fallthru
      _
    // Predicated region
    $region78: #{_lambda_.1} parent=1 // pred_check
      _
    $region79: #{_lambda_.1} parent=1 // pred_check_branch
      %2116 = sbr.rel (0) target = $region81
    $region80: #{_lambda_.1} parent=1 // pred_region
      %s2118 = ssub.s32 64, 64
      %2119 = vsyncadd [#allocation6], %s2118
      %s2120 = sshll.u32 [#allocation15], 4
      %s2121 = int_to_ptr.vmem [resolvable:$true] %s2120
      %2126 = dma.vmem_to_hbm [thread:$0]  %s2121, 64, %s13, [#allocation6], 32, 32, 2
    $region81: #{_lambda_.1} parent=1 // pred_fallthru
      _
    // Predicated region
    $region82: #{_lambda_.1} parent=1 // pred_check
      _
    $region83: #{_lambda_.1} parent=1 // pred_check_branch
      %2128 = sbr.rel (0) target = $region85
    $region84: #{_lambda_.1} parent=1 // pred_region
      %s2130 = ssub.s32 64, 64
      %2131 = vsyncadd [#allocation17], %s2130
      %s2132 = sshll.u32 [#allocation16], 4
      %s2133 = int_to_ptr.vmem [resolvable:$true] %s2132
      %2138 = dma.vmem_to_hbm [thread:$0]  %s2133, 64, %s14, [#allocation17], 32, 32, 2
    $region85: #{_lambda_.1} parent=1 // pred_fallthru
      _
    // Predicated region
    $region86: #{_lambda_.1} parent=1 // pred_check
      _
    $region87: #{_lambda_.1} parent=1 // pred_check_branch
      %2140 = sbr.rel (0) target = $region89
    $region88: #{_lambda_.1} parent=1 // pred_region
      _
    $region89: #{_lambda_.1} parent=1 // pred_fallthru
      _
    // Predicated region
    $region90: #{_lambda_.1} parent=1 // pred_check
      _
    $region91: #{_lambda_.1} parent=1 // pred_check_branch
      %2142 = sbr.rel (0) target = $region93
    $region92: #{_lambda_.1} parent=1 // pred_region
      _
    $region93: #{_lambda_.1} parent=1 // pred_fallthru
      _
    // Predicated region
    $region94: #{_lambda_.1} parent=1 // pred_check
      _
    $region95: #{_lambda_.1} parent=1 // pred_check_branch
      %2144 = sbr.rel (0) target = $region97
    $region96: #{_lambda_.1} parent=1 // pred_region
      %2145 = dma.done [#allocation6], 64
    $region97: #{_lambda_.1} parent=1 // pred_fallthru
      _
    // Predicated region
    $region98: #{_lambda_.1} parent=1 // pred_check
      _
    $region99: #{_lambda_.1} parent=1 // pred_check_branch
      %2147 = sbr.rel (0) target = $region101
    $region100: #{_lambda_.1} parent=1 // pred_region
      %2148 = dma.done [#allocation17], 64
    $region101: #{_lambda_.1} parent=1 // pred_fallthru
      _
    %2149 = vsyncpa [#allocation5], 1
    %2150 = vsyncpa [#allocation8], 1
    %2151 = vsyncpa [#allocation11], 1
    %2152 = vsyncpa [#allocation14], 1
    %2153 = vsyncpa [#allocation6], 1
    %2154 = vsyncpa [#allocation17], 1

</llo_original>
